<compile_context>
chip_gen: v6e
topology: v6e:2x2x1
jax: 0.10.0
libtpu: 0.0.40
codegen_flags: <defaults>
</compile_context>

<pallas_src>
import jax
import jax.numpy as jnp
import numpy as np
from jax.experimental import pallas as pl
from jax.experimental.pallas import tpu as pltpu


def conv2d_size_out(size, kernel_size=3, stride=1):
    return (size - (kernel_size - 1) - 1) // stride + 1


def _round_up(x, m):
    return ((x + m - 1) // m) * m


# ----------------------------------------------------------------------------
# Fused Pallas kernel: one grid step == one batch tile (TB images), 4 matmuls.
# ----------------------------------------------------------------------------
def _qfunction_kernel(x_ref, w1_ref, b1_ref, w2_ref, b2_ref, w3_ref, b3_ref,
                      wh_ref, bh_ref, o_ref):
    f32 = jnp.float32
    cdt = w1_ref.dtype                       # bf16 compute dtype for the convs

    x = x_ref[...]                           # (TB, H*W*C) bf16
    a1 = jnp.maximum(
        jnp.dot(x, w1_ref[...], preferred_element_type=f32) + b1_ref[...], 0.0)
    a2 = jnp.maximum(
        jnp.dot(a1.astype(cdt), w2_ref[...], preferred_element_type=f32)
        + b2_ref[...], 0.0)
    a3 = jnp.maximum(
        jnp.dot(a2.astype(cdt), w3_ref[...], preferred_element_type=f32)
        + b3_ref[...], 0.0)
    # Head kept in f32 (weights are tiny) so Q-value argmax ties are stable.
    q = jnp.dot(a3, wh_ref[...], preferred_element_type=f32) + bh_ref[...]
    # Lane-dense store: the batch tile sits on the 128-lane axis, not the 4-wide
    # head dimension.
    o_ref[...] = q.T.astype(o_ref.dtype)     # (outputs, TB)


# ----------------------------------------------------------------------------
# pallas_call wrapper
# ----------------------------------------------------------------------------
def qfunction_forward(x_nchw, packed, max_tile_batch=256):
    """Fused QFunction forward.  Returns the (N, outputs) Q-value matrix."""
    assert max_tile_batch % 128 == 0
    N, C, H, W = x_nchw.shape
    feat = H * W * C
    outputs = packed["wh"].shape[1]
    cdt = packed["w1"].dtype
    assert packed["w1"].shape[0] == feat

    # Batch tile: whole (8-rounded) batch when small, otherwise a 128-multiple so
    # the transposed (outputs, TB) output block is lane aligned and the grid >= 2.
    n8 = _round_up(N, 8)
    tb = n8 if n8 <= max_tile_batch else max_tile_batch
    n_pad = _round_up(N, tb)

    # Single cheap layout change of the network input: NCHW -> (N, H*W*C),
    # channel fastest; zero-pad the batch tail so every tile is full.
    x2d = jnp.transpose(x_nchw, (0, 2, 3, 1)).reshape(N, feat).astype(cdt)
    if n_pad != N:
        x2d = jnp.pad(x2d, ((0, n_pad - N), (0, 0)))

    order = ("w1", "b1", "w2", "b2", "w3", "b3", "wh", "bh")
    mm_terms = sum(int(packed[k].shape[0]) * int(packed[k].shape[1])
                   for k in ("w1", "w2", "w3", "wh"))
    weight_bytes = sum(int(packed[k].size) * packed[k].dtype.itemsize
                       for k in order)
    cost = pl.CostEstimate(
        flops=2 * n_pad * mm_terms,
        transcendentals=0,
        bytes_accessed=int(n_pad * feat * x2d.dtype.itemsize + weight_bytes
                           + n_pad * outputs * 4))

    q_t = pl.pallas_call(
        _qfunction_kernel,
        out_shape=jax.ShapeDtypeStruct((outputs, n_pad), jnp.float32),
        grid=(n_pad // tb,),
        in_specs=[pl.BlockSpec((tb, feat), lambda b: (b, 0))]
        + [pl.BlockSpec(packed[k].shape, lambda b: (0, 0)) for k in order],
        out_specs=pl.BlockSpec((outputs, tb), lambda b: (0, b)),
        compiler_params=pltpu.CompilerParams(dimension_semantics=("parallel",)),
        cost_estimate=cost,
    )(x2d, *[packed[k] for k in order])

    # TODO(synk): pfrl.action_value.DiscreteActionValue is a non-tensor wrapper;
    # returning the raw Q-value matrix instead.
    return q_t[:, :N].T


# ----------------------------------------------------------------------------
# One-time offline parameter prep: BN folding + dense per-layer operator packing.
# ----------------------------------------------------------------------------
def _fold_bn(conv_w, conv_b, bn, eps=1e-5):
    """Fold inference-mode BatchNorm into a scaled conv weight and a shift."""
    scale = np.asarray(bn["gamma"], np.float32) / np.sqrt(
        np.asarray(bn["var"], np.float32) + eps)
    w = np.asarray(conv_w, np.float32) * scale[:, None, None, None]
    shift = (np.asarray(conv_b, np.float32)
             - np.asarray(bn["mean"], np.float32)) * scale \
        + np.asarray(bn["beta"], np.float32)
    return w, shift


def _conv_to_dense(w, shift, in_h, in_w, stride):
    """Pack a (Cout, Cin, KH, KW) conv into a dense (IH*IW*Cin, OH*OW*Cout) matrix.

    Flatten order on both sides is channel-fastest: index = (h*W + w)*C + c.
    dense[((oh*s+kh)*IW + (ow*s+kw))*Cin + ci, (oh*OW + ow)*Cout + co] = w[co,ci,kh,kw]
    """
    w = np.asarray(w, np.float32)
    shift = np.asarray(shift, np.float32)
    cout, cin, n_kh, n_kw = w.shape
    oh_n = conv2d_size_out(in_h, n_kh, stride)
    ow_n = conv2d_size_out(in_w, n_kw, stride)
    dense = np.zeros((in_h * in_w * cin, oh_n * ow_n * cout), np.float32)
    for kh in range(n_kh):
        for kw in range(n_kw):
            w_t = w[:, :, kh, kw].T            # (Cin, Cout)
            for oh in range(oh_n):
                ih = oh * stride + kh
                for ow in range(ow_n):
                    iw = ow * stride + kw
                    r0 = (ih * in_w + iw) * cin
                    c0 = (oh * ow_n + ow) * cout
                    dense[r0:r0 + cin, c0:c0 + cout] = w_t
    bias_row = np.tile(shift, oh_n * ow_n)[None, :]
    return dense, bias_row


def pack_params(params, h, w, outputs, dtype=jnp.bfloat16):
    oh1, ow1 = conv2d_size_out(h, 3, 2), conv2d_size_out(w, 3, 2)
    oh2, ow2 = conv2d_size_out(oh1), conv2d_size_out(ow1)
    oh3, ow3 = conv2d_size_out(oh2), conv2d_size_out(ow2)

    w1, s1 = _fold_bn(params["conv1_w"], params["conv1_b"], params["bn1"])
    w2, s2 = _fold_bn(params["conv2_w"], params["conv2_b"], params["bn2"])
    w3, s3 = _fold_bn(params["conv3_w"], params["conv3_b"], params["bn3"])

    d1, b1 = _conv_to_dense(w1, s1, h, w, 2)
    d2, b2 = _conv_to_dense(w2, s2, oh1, ow1, 1)
    d3, b3 = _conv_to_dense(w3, s3, oh2, ow2, 1)

    # Head: PyTorch flattens NCHW ([c][h][w]); permute to the in-kernel
    # channel-fastest ([h][w][c]) order.  Kept in f32 (precision, tiny cost).
    head_w = np.asarray(params["head_w"], np.float32)
    wh = head_w.reshape(outputs, 16, oh3, ow3).transpose(2, 3, 1, 0) \
        .reshape(oh3 * ow3 * 16, outputs)
    bh = np.asarray(params["head_b"], np.float32)[None, :]

    return {
        "w1": jnp.asarray(d1, dtype), "b1": jnp.asarray(b1, jnp.float32),
        "w2": jnp.asarray(d2, dtype), "b2": jnp.asarray(b2, jnp.float32),
        "w3": jnp.asarray(d3, dtype), "b3": jnp.asarray(b3, jnp.float32),
        "wh": jnp.asarray(wh, jnp.float32), "bh": jnp.asarray(bh, jnp.float32),
    }


# ----------------------------------------------------------------------------
# Pure-JAX reference (same math, unfused) + synthetic parameters
# ----------------------------------------------------------------------------
def _reference_forward(x, params, eps=1e-5):
    def conv_bn_relu(x, w, b, bn, stride):
        y = jax.lax.conv_general_dilated(
            x, w, (stride, stride), "VALID",
            dimension_numbers=("NCHW", "OIHW", "NCHW"))
        y = y + b[None, :, None, None]
        scale = bn["gamma"] / jnp.sqrt(bn["var"] + eps)
        y = (y - bn["mean"][None, :, None, None]) * scale[None, :, None, None] \
            + bn["beta"][None, :, None, None]
        return jnp.maximum(y, 0.0)

    y = conv_bn_relu(x, params["conv1_w"], params["conv1_b"], params["bn1"], 2)
    y = conv_bn_relu(y, params["conv2_w"], params["conv2_b"], params["bn2"], 1)
    y = conv_bn_relu(y, params["conv3_w"], params["conv3_b"], params["bn3"], 1)
    flat = y.reshape(y.shape[0], -1)
    return flat @ params["head_w"].T + params["head_b"]


def make_params(key, h, w, outputs):
    convw = conv2d_size_out(conv2d_size_out(conv2d_size_out(w, stride=2)))
    convh = conv2d_size_out(conv2d_size_out(conv2d_size_out(h, stride=2)))
    lin_in = convw * convh * 16

    keys = jax.random.split(key, 16)
    norm = lambda k, s, sc=0.1: sc * jax.random.normal(k, s, jnp.float32)

    def bn(k, c):
        k1, k2, k3, k4 = jax.random.split(k, 4)
        return {
            "gamma": 1.0 + norm(k1, (c,)),
            "beta": norm(k2, (c,)),
            "mean": norm(k3, (c,)),
            "var": 0.5 + jax.random.uniform(k4, (c,), jnp.float32),
        }

    return {
        "conv1_w": norm(keys[0], (8, 3, 3, 3)),
        "conv1_b": norm(keys[1], (8,)),
        "bn1": bn(keys[2], 8),
        "conv2_w": norm(keys[3], (16, 8, 3, 3)),
        "conv2_b": norm(keys[4], (16,)),
        "bn2": bn(keys[5], 16),
        "conv3_w": norm(keys[6], (16, 16, 3, 3)),
        "conv3_b": norm(keys[7], (16,)),
        "bn3": bn(keys[8], 16),
        "head_w": norm(keys[9], (outputs, lin_in)),
        "head_b": norm(keys[10], (outputs,)),
    }


if __name__ == "__main__":
    H, W, OUTPUTS = 16, 16, 4
    key = jax.random.PRNGKey(0)
    kx1, kx2, kp = jax.random.split(key, 3)
    params = make_params(kp, H, W, OUTPUTS)
    packed = pack_params(params, H, W, OUTPUTS, dtype=jnp.bfloat16)

    fwd = jax.jit(qfunction_forward)

    # Small batch (single tile) and a larger batch (multi-tile grid + tail pad).
    for kx, batch in ((kx1, 4), (kx2, 300)):
        x = jax.random.normal(kx, (batch, 3, H, W), jnp.float32)   # NCHW input
        q = jax.block_until_ready(fwd(x, packed))
        assert q.shape == (batch, OUTPUTS), q.shape
        ref = _reference_forward(x, params)
        assert jnp.allclose(q, ref, rtol=5e-2, atol=5e-2), (
            float(jnp.max(jnp.abs(q - ref))))
    print("KERNEL_OK")
</pallas_src>

<mosaic_0001>
module attributes {stable_mosaic.version = 11 : i64} {
  func.func @_qfunction_kernel(%arg0: i32, %arg1: memref<8x768xbf16, #tpu.memory_space<vmem>>, %arg2: memref<768x392xbf16, #tpu.memory_space<vmem>>, %arg3: memref<1x392xf32, #tpu.memory_space<vmem>>, %arg4: memref<392x400xbf16, #tpu.memory_space<vmem>>, %arg5: memref<1x400xf32, #tpu.memory_space<vmem>>, %arg6: memref<400x144xbf16, #tpu.memory_space<vmem>>, %arg7: memref<1x144xf32, #tpu.memory_space<vmem>>, %arg8: memref<144x4xf32, #tpu.memory_space<vmem>>, %arg9: memref<1x4xf32, #tpu.memory_space<vmem>>, %arg10: memref<4x8xf32, #tpu.memory_space<vmem>>) attributes {dimension_semantics = [#tpu.dimension_semantics<parallel>], iteration_bounds = array<i64: 1>, scalar_prefetch = 0 : i64, scratch_operands = 0 : i64, tpu.core_type = #tpu.core_type<tc>, window_params = [{transform_indices = @transform_0, window_bounds = array<i64: 8, 768>}, {pipeline_mode = #tpu.pipeline_mode<synchronous>, transform_indices = @transform_1, window_bounds = array<i64: 768, 392>}, {pipeline_mode = #tpu.pipeline_mode<synchronous>, transform_indices = @transform_2, window_bounds = array<i64: 1, 392>}, {pipeline_mode = #tpu.pipeline_mode<synchronous>, transform_indices = @transform_3, window_bounds = array<i64: 392, 400>}, {pipeline_mode = #tpu.pipeline_mode<synchronous>, transform_indices = @transform_4, window_bounds = array<i64: 1, 400>}, {pipeline_mode = #tpu.pipeline_mode<synchronous>, transform_indices = @transform_5, window_bounds = array<i64: 400, 144>}, {pipeline_mode = #tpu.pipeline_mode<synchronous>, transform_indices = @transform_6, window_bounds = array<i64: 1, 144>}, {pipeline_mode = #tpu.pipeline_mode<synchronous>, transform_indices = @transform_7, window_bounds = array<i64: 144, 4>}, {pipeline_mode = #tpu.pipeline_mode<synchronous>, transform_indices = @transform_8, window_bounds = array<i64: 1, 4>}, {transform_indices = @transform_9, window_bounds = array<i64: 4, 8>}]} {
    %c0 = arith.constant 0 : index
    %c0_0 = arith.constant 0 : index
    %0 = vector.load %arg1[%c0, %c0_0] : memref<8x768xbf16, #tpu.memory_space<vmem>>, vector<8x768xbf16>
    %c0_1 = arith.constant 0 : index
    %c0_2 = arith.constant 0 : index
    %1 = vector.load %arg2[%c0_1, %c0_2] : memref<768x392xbf16, #tpu.memory_space<vmem>>, vector<768x392xbf16>
    %cst = arith.constant dense<0.000000e+00> : vector<8x392xf32>
    %2 = tpu.matmul %0, %1, %cst {dimension_numbers = #tpu.dot_dimension_numbers<[1], [0], [0], [1], [0, 0, 1, 1], [], []>} : vector<8x768xbf16>, vector<768x392xbf16>, vector<8x392xf32> -> vector<8x392xf32>
    %c0_3 = arith.constant 0 : index
    %c0_4 = arith.constant 0 : index
    %3 = vector.load %arg3[%c0_3, %c0_4] : memref<1x392xf32, #tpu.memory_space<vmem>>, vector<1x392xf32>
    %4 = vector.broadcast %3 : vector<1x392xf32> to vector<8x392xf32>
    %5 = arith.addf %2, %4 : vector<8x392xf32>
    %cst_5 = arith.constant 0.000000e+00 : f32
    %6 = vector.broadcast %cst_5 : f32 to vector<8x392xf32>
    %7 = arith.maximumf %5, %6 : vector<8x392xf32>
    %8 = arith.truncf %7 : vector<8x392xf32> to vector<8x392xbf16>
    %c0_6 = arith.constant 0 : index
    %c0_7 = arith.constant 0 : index
    %9 = vector.load %arg4[%c0_6, %c0_7] : memref<392x400xbf16, #tpu.memory_space<vmem>>, vector<392x400xbf16>
    %cst_8 = arith.constant dense<0.000000e+00> : vector<8x400xf32>
    %10 = tpu.matmul %8, %9, %cst_8 {dimension_numbers = #tpu.dot_dimension_numbers<[1], [0], [0], [1], [0, 0, 1, 1], [], []>} : vector<8x392xbf16>, vector<392x400xbf16>, vector<8x400xf32> -> vector<8x400xf32>
    %c0_9 = arith.constant 0 : index
    %c0_10 = arith.constant 0 : index
    %11 = vector.load %arg5[%c0_9, %c0_10] : memref<1x400xf32, #tpu.memory_space<vmem>>, vector<1x400xf32>
    %12 = vector.broadcast %11 : vector<1x400xf32> to vector<8x400xf32>
    %13 = arith.addf %10, %12 : vector<8x400xf32>
    %cst_11 = arith.constant 0.000000e+00 : f32
    %14 = vector.broadcast %cst_11 : f32 to vector<8x400xf32>
    %15 = arith.maximumf %13, %14 : vector<8x400xf32>
    %16 = arith.truncf %15 : vector<8x400xf32> to vector<8x400xbf16>
    %c0_12 = arith.constant 0 : index
    %c0_13 = arith.constant 0 : index
    %17 = vector.load %arg6[%c0_12, %c0_13] : memref<400x144xbf16, #tpu.memory_space<vmem>>, vector<400x144xbf16>
    %cst_14 = arith.constant dense<0.000000e+00> : vector<8x144xf32>
    %18 = tpu.matmul %16, %17, %cst_14 {dimension_numbers = #tpu.dot_dimension_numbers<[1], [0], [0], [1], [0, 0, 1, 1], [], []>} : vector<8x400xbf16>, vector<400x144xbf16>, vector<8x144xf32> -> vector<8x144xf32>
    %c0_15 = arith.constant 0 : index
    %c0_16 = arith.constant 0 : index
    %19 = vector.load %arg7[%c0_15, %c0_16] : memref<1x144xf32, #tpu.memory_space<vmem>>, vector<1x144xf32>
    %20 = vector.broadcast %19 : vector<1x144xf32> to vector<8x144xf32>
    %21 = arith.addf %18, %20 : vector<8x144xf32>
    %cst_17 = arith.constant 0.000000e+00 : f32
    %22 = vector.broadcast %cst_17 : f32 to vector<8x144xf32>
    %23 = arith.maximumf %21, %22 : vector<8x144xf32>
    %c0_18 = arith.constant 0 : index
    %c0_19 = arith.constant 0 : index
    %24 = vector.load %arg8[%c0_18, %c0_19] : memref<144x4xf32, #tpu.memory_space<vmem>>, vector<144x4xf32>
    %cst_20 = arith.constant dense<0.000000e+00> : vector<8x4xf32>
    %25 = tpu.matmul %23, %24, %cst_20 {dimension_numbers = #tpu.dot_dimension_numbers<[1], [0], [0], [1], [0, 0, 1, 1], [], []>} : vector<8x144xf32>, vector<144x4xf32>, vector<8x4xf32> -> vector<8x4xf32>
    %c0_21 = arith.constant 0 : index
    %c0_22 = arith.constant 0 : index
    %26 = vector.load %arg9[%c0_21, %c0_22] : memref<1x4xf32, #tpu.memory_space<vmem>>, vector<1x4xf32>
    %27 = vector.broadcast %26 : vector<1x4xf32> to vector<8x4xf32>
    %28 = arith.addf %25, %27 : vector<8x4xf32>
    %29 = tpu.transpose %28, [1, 0] : vector<8x4xf32> -> vector<4x8xf32>
    %c0_23 = arith.constant 0 : index
    %c0_24 = arith.constant 0 : index
    %30 = vector.load %arg10[%c0_23, %c0_24] : memref<4x8xf32, #tpu.memory_space<vmem>>, vector<4x8xf32>
    tpu.vector_store %arg10[%c0_23, %c0_24], %29 {strides = array<i32>} : memref<4x8xf32, #tpu.memory_space<vmem>>, vector<4x8xf32>,
    return
  }
  func.func @transform_0(%arg0: i32) -> (i32, i32) {
    %c0_i32 = arith.constant 0 : i32
    %c0_i32_0 = arith.constant 0 : i32
    return %arg0, %c0_i32 : i32, i32
  }
  func.func @transform_1(%arg0: i32) -> (i32, i32) {
    %c0_i32 = arith.constant 0 : i32
    %c0_i32_0 = arith.constant 0 : i32
    %c0_i32_1 = arith.constant 0 : i32
    return %c0_i32, %c0_i32_0 : i32, i32
  }
  func.func @transform_2(%arg0: i32) -> (i32, i32) {
    %c0_i32 = arith.constant 0 : i32
    %c0_i32_0 = arith.constant 0 : i32
    %c0_i32_1 = arith.constant 0 : i32
    return %c0_i32, %c0_i32_0 : i32, i32
  }
  func.func @transform_3(%arg0: i32) -> (i32, i32) {
    %c0_i32 = arith.constant 0 : i32
    %c0_i32_0 = arith.constant 0 : i32
    %c0_i32_1 = arith.constant 0 : i32
    return %c0_i32, %c0_i32_0 : i32, i32
  }
  func.func @transform_4(%arg0: i32) -> (i32, i32) {
    %c0_i32 = arith.constant 0 : i32
    %c0_i32_0 = arith.constant 0 : i32
    %c0_i32_1 = arith.constant 0 : i32
    return %c0_i32, %c0_i32_0 : i32, i32
  }
  func.func @transform_5(%arg0: i32) -> (i32, i32) {
    %c0_i32 = arith.constant 0 : i32
    %c0_i32_0 = arith.constant 0 : i32
    %c0_i32_1 = arith.constant 0 : i32
    return %c0_i32, %c0_i32_0 : i32, i32
  }
  func.func @transform_6(%arg0: i32) -> (i32, i32) {
    %c0_i32 = arith.constant 0 : i32
    %c0_i32_0 = arith.constant 0 : i32
    %c0_i32_1 = arith.constant 0 : i32
    return %c0_i32, %c0_i32_0 : i32, i32
  }
  func.func @transform_7(%arg0: i32) -> (i32, i32) {
    %c0_i32 = arith.constant 0 : i32
    %c0_i32_0 = arith.constant 0 : i32
    %c0_i32_1 = arith.constant 0 : i32
    return %c0_i32, %c0_i32_0 : i32, i32
  }
  func.func @transform_8(%arg0: i32) -> (i32, i32) {
    %c0_i32 = arith.constant 0 : i32
    %c0_i32_0 = arith.constant 0 : i32
    %c0_i32_1 = arith.constant 0 : i32
    return %c0_i32, %c0_i32_0 : i32, i32
  }
  func.func @transform_9(%arg0: i32) -> (i32, i32) {
    %c0_i32 = arith.constant 0 : i32
    %c0_i32_0 = arith.constant 0 : i32
    return %c0_i32, %arg0 : i32, i32
  }
}

</mosaic_0001>

<llo_original>
// kernel: qfunction_forward.1
$region0: #{qfunction_forward.1}
  #allocation0 [shape = 'u32[]', space=smem, size = 0x4, offset = 0x4, fixed_abs, tag = 'smem constant byte address 0x4 - core index']
  #allocation1 [shape = 'u32[144,128]{1,0:T(1,128)}', space=vmem, size = 0x12000, scoped, tag = 'internal scratch']
  %s0 = inlined_call_operand.vmem [shape: bf16[8,768], index: 0, kind: input, shape index: {}]
  %s1 = inlined_call_operand.vmem [shape: bf16[768,392], index: 1, kind: input, shape index: {}]
  %s2 = inlined_call_operand.vmem [shape: f32[1,392], index: 2, kind: input, shape index: {}]
  %s3 = inlined_call_operand.vmem [shape: bf16[392,400], index: 3, kind: input, shape index: {}]
  %s4 = inlined_call_operand.vmem [shape: f32[1,400], index: 4, kind: input, shape index: {}]
  %s5 = inlined_call_operand.vmem [shape: bf16[400,144], index: 5, kind: input, shape index: {}]
  %s6 = inlined_call_operand.vmem [shape: f32[1,144], index: 6, kind: input, shape index: {}]
  %s7 = inlined_call_operand.vmem [shape: f32[144,4], index: 7, kind: input, shape index: {}]
  %s8 = inlined_call_operand.vmem [shape: f32[1,4], index: 8, kind: input, shape index: {}]
  %s9 = inlined_call_operand.vmem [shape: f32[4,8], index: 9, kind: output, shape index: {}]
  %s10 = sld [smem:[#allocation0]]
  $region46: #{qfunction_forward.1} parent=0
    _
  %s12 = ssub.s32 1, %s10
  %s13 = scalar_select 0, %s12, %s10
  // Predicated region
  $region2: #{qfunction_forward.1} parent=0 // pred_check
    _
  $region3: #{qfunction_forward.1} parent=0 // pred_check_branch
    %15 = sbr.rel (0) target = $region5
  $region4: #{qfunction_forward.1} parent=0 // pred_region
    _
  $region5: #{qfunction_forward.1} parent=0 // pred_fallthru
    _
  // Predicated region
  $region6: #{qfunction_forward.1} parent=0 // pred_check
    _
  $region7: #{qfunction_forward.1} parent=0 // pred_check_branch
    %17 = sbr.rel (0) target = $region9
  $region8: #{qfunction_forward.1} parent=0 // pred_region
    _
  $region9: #{qfunction_forward.1} parent=0 // pred_fallthru
    _
  // Predicated region
  $region10: #{qfunction_forward.1} parent=0 // pred_check
    _
  $region11: #{qfunction_forward.1} parent=0 // pred_check_branch
    %19 = sbr.rel (0) target = $region13
  $region12: #{qfunction_forward.1} parent=0 // pred_region
    _
  $region13: #{qfunction_forward.1} parent=0 // pred_fallthru
    _
  // Predicated region
  $region14: #{qfunction_forward.1} parent=0 // pred_check
    _
  $region15: #{qfunction_forward.1} parent=0 // pred_check_branch
    %21 = sbr.rel (0) target = $region17
  $region16: #{qfunction_forward.1} parent=0 // pred_region
    _
  $region17: #{qfunction_forward.1} parent=0 // pred_fallthru
    _
  // Predicated region
  $region18: #{qfunction_forward.1} parent=0 // pred_check
    _
  $region19: #{qfunction_forward.1} parent=0 // pred_check_branch
    %23 = sbr.rel (0) target = $region21
  $region20: #{qfunction_forward.1} parent=0 // pred_region
    _
  $region21: #{qfunction_forward.1} parent=0 // pred_fallthru
    _
  // Predicated region
  $region22: #{qfunction_forward.1} parent=0 // pred_check
    _
  $region23: #{qfunction_forward.1} parent=0 // pred_check_branch
    %25 = sbr.rel (0) target = $region25
  $region24: #{qfunction_forward.1} parent=0 // pred_region
    _
  $region25: #{qfunction_forward.1} parent=0 // pred_fallthru
    _
  // Predicated region
  $region26: #{qfunction_forward.1} parent=0 // pred_check
    _
  $region27: #{qfunction_forward.1} parent=0 // pred_check_branch
    %27 = sbr.rel (0) target = $region29
  $region28: #{qfunction_forward.1} parent=0 // pred_region
    _
  $region29: #{qfunction_forward.1} parent=0 // pred_fallthru
    _
  // Predicated region
  $region30: #{qfunction_forward.1} parent=0 // pred_check
    _
  $region31: #{qfunction_forward.1} parent=0 // pred_check_branch
    %29 = sbr.rel (0) target = $region33
  $region32: #{qfunction_forward.1} parent=0 // pred_region
    _
  $region33: #{qfunction_forward.1} parent=0 // pred_fallthru
    _
  // Predicated region
  $region34: #{qfunction_forward.1} parent=0 // pred_check
    _
  $region35: #{qfunction_forward.1} parent=0 // pred_check_branch
    %31 = sbr.rel (0) target = $region37
  $region36: #{qfunction_forward.1} parent=0 // pred_region
    _
  $region37: #{qfunction_forward.1} parent=0 // pred_fallthru
    _
  %v33 = vld [vmem:[%s0] sm:$0xff]
  %v34 = vld [vmem:[%s0 + $0x8] sm:$0xff]
  %v35 = vld [vmem:[%s0 + $0x10] sm:$0xff]
  %v36 = vld [vmem:[%s1] sm:$0xff]
  %v37 = vld [vmem:[%s1 + $0x8] sm:$0xff]
  %v38 = vld [vmem:[%s1 + $0x10] sm:$0xff]
  %v39 = vld [vmem:[%s1 + $0x18] sm:$0xff]
  %v40 = vld [vmem:[%s1 + $0x20] sm:$0xff]
  %v41 = vld [vmem:[%s1 + $0x28] sm:$0xff]
  %v42 = vld [vmem:[%s1 + $0x30] sm:$0xff]
  %v43 = vld [vmem:[%s1 + $0x38] sm:$0xff]
  %v44 = vld [vmem:[%s1 + $0x40] sm:$0xff]
  %v45 = vld [vmem:[%s1 + $0x48] sm:$0xff]
  %v46 = vld [vmem:[%s1 + $0x50] sm:$0xff]
  %v47 = vld [vmem:[%s1 + $0x58] sm:$0xff]
  %v48 = vld [vmem:[%s1 + $0x60] sm:$0xff]
  %v49 = vld [vmem:[%s1 + $0x68] sm:$0xff]
  %v50 = vld [vmem:[%s1 + $0x70] sm:$0xff]
  %v51 = vld [vmem:[%s1 + $0x78] sm:$0xff]
  %v52 = vld [vmem:[%s1 + $0x80] sm:$0xff]
  %v53 = vld [vmem:[%s1 + $0x88] sm:$0xff]
  %v54 = vld [vmem:[%s1 + $0x90] sm:$0xff]
  %v55 = vld [vmem:[%s1 + $0x98] sm:$0xff]
  %v56 = vld [vmem:[%s1 + $0xa0] sm:$0xff]
  %v57 = vld [vmem:[%s1 + $0xa8] sm:$0xff]
  %v58 = vld [vmem:[%s1 + $0xb0] sm:$0xff]
  %v59 = vld [vmem:[%s1 + $0xb8] sm:$0xff]
  %v60 = vld [vmem:[%s1 + $0xc0] sm:$0xff]
  %v61 = vld [vmem:[%s1 + $0xc8] sm:$0xff]
  %v62 = vld [vmem:[%s1 + $0xd0] sm:$0xff]
  %v63 = vld [vmem:[%s1 + $0xd8] sm:$0xff]
  %v64 = vld [vmem:[%s1 + $0xe0] sm:$0xff]
  %v65 = vld [vmem:[%s1 + $0xe8] sm:$0xff]
  %v66 = vld [vmem:[%s1 + $0xf0] sm:$0xff]
  %v67 = vld [vmem:[%s1 + $0xf8] sm:$0xff]
  %v68 = vld [vmem:[%s1 + $0x100] sm:$0xff]
  %v69 = vld [vmem:[%s1 + $0x108] sm:$0xff]
  %v70 = vld [vmem:[%s1 + $0x110] sm:$0xff]
  %v71 = vld [vmem:[%s1 + $0x118] sm:$0xff]
  %v72 = vld [vmem:[%s1 + $0x120] sm:$0xff]
  %v73 = vld [vmem:[%s1 + $0x128] sm:$0xff]
  %v74 = vld [vmem:[%s1 + $0x130] sm:$0xff]
  %v75 = vld [vmem:[%s1 + $0x138] sm:$0xff]
  %v76 = vld [vmem:[%s1 + $0x140] sm:$0xff]
  %v77 = vld [vmem:[%s1 + $0x148] sm:$0xff]
  %v78 = vld [vmem:[%s1 + $0x150] sm:$0xff]
  %v79 = vld [vmem:[%s1 + $0x158] sm:$0xff]
  %v80 = vld [vmem:[%s1 + $0x160] sm:$0xff]
  %v81 = vld [vmem:[%s1 + $0x168] sm:$0xff]
  %v82 = vld [vmem:[%s1 + $0x170] sm:$0xff]
  %v83 = vld [vmem:[%s1 + $0x178] sm:$0xff]
  %v84 = vld [vmem:[%s1 + $0x180] sm:$0xff]
  %v85 = vld [vmem:[%s1 + $0x188] sm:$0xff]
  %v86 = vld [vmem:[%s1 + $0x190] sm:$0xff]
  %v87 = vld [vmem:[%s1 + $0x198] sm:$0xff]
  %v88 = vld [vmem:[%s1 + $0x1a0] sm:$0xff]
  %v89 = vld [vmem:[%s1 + $0x1a8] sm:$0xff]
  %v90 = vld [vmem:[%s1 + $0x1b0] sm:$0xff]
  %v91 = vld [vmem:[%s1 + $0x1b8] sm:$0xff]
  %v92 = vld [vmem:[%s1 + $0x1c0] sm:$0xff]
  %v93 = vld [vmem:[%s1 + $0x1c8] sm:$0xff]
  %v94 = vld [vmem:[%s1 + $0x1d0] sm:$0xff]
  %v95 = vld [vmem:[%s1 + $0x1d8] sm:$0xff]
  %v96 = vld [vmem:[%s1 + $0x1e0] sm:$0xff]
  %v97 = vld [vmem:[%s1 + $0x1e8] sm:$0xff]
  %v98 = vld [vmem:[%s1 + $0x1f0] sm:$0xff]
  %v99 = vld [vmem:[%s1 + $0x1f8] sm:$0xff]
  %v100 = vld [vmem:[%s1 + $0x200] sm:$0xff]
  %v101 = vld [vmem:[%s1 + $0x208] sm:$0xff]
  %v102 = vld [vmem:[%s1 + $0x210] sm:$0xff]
  %v103 = vld [vmem:[%s1 + $0x218] sm:$0xff]
  %v104 = vld [vmem:[%s1 + $0x220] sm:$0xff]
  %v105 = vld [vmem:[%s1 + $0x228] sm:$0xff]
  %v106 = vld [vmem:[%s1 + $0x230] sm:$0xff]
  %v107 = vld [vmem:[%s1 + $0x238] sm:$0xff]
  %v108 = vld [vmem:[%s1 + $0x240] sm:$0xff]
  %v109 = vld [vmem:[%s1 + $0x248] sm:$0xff]
  %v110 = vld [vmem:[%s1 + $0x250] sm:$0xff]
  %v111 = vld [vmem:[%s1 + $0x258] sm:$0xff]
  %v112 = vld [vmem:[%s1 + $0x260] sm:$0xff]
  %v113 = vld [vmem:[%s1 + $0x268] sm:$0xff]
  %v114 = vld [vmem:[%s1 + $0x270] sm:$0xff]
  %v115 = vld [vmem:[%s1 + $0x278] sm:$0xff]
  %v116 = vld [vmem:[%s1 + $0x280] sm:$0xff]
  %v117 = vld [vmem:[%s1 + $0x288] sm:$0xff]
  %v118 = vld [vmem:[%s1 + $0x290] sm:$0xff]
  %v119 = vld [vmem:[%s1 + $0x298] sm:$0xff]
  %v120 = vld [vmem:[%s1 + $0x2a0] sm:$0xff]
  %v121 = vld [vmem:[%s1 + $0x2a8] sm:$0xff]
  %v122 = vld [vmem:[%s1 + $0x2b0] sm:$0xff]
  %v123 = vld [vmem:[%s1 + $0x2b8] sm:$0xff]
  %v124 = vld [vmem:[%s1 + $0x2c0] sm:$0xff]
  %v125 = vld [vmem:[%s1 + $0x2c8] sm:$0xff]
  %v126 = vld [vmem:[%s1 + $0x2d0] sm:$0xff]
  %v127 = vld [vmem:[%s1 + $0x2d8] sm:$0xff]
  %v128 = vld [vmem:[%s1 + $0x2e0] sm:$0xff]
  %v129 = vld [vmem:[%s1 + $0x2e8] sm:$0xff]
  %v130 = vld [vmem:[%s1 + $0x2f0] sm:$0xff]
  %v131 = vld [vmem:[%s1 + $0x2f8] sm:$0xff]
  %v132 = vld [vmem:[%s1 + $0x300] sm:$0xff]
  %v133 = vld [vmem:[%s1 + $0x308] sm:$0xff]
  %v134 = vld [vmem:[%s1 + $0x310] sm:$0xff]
  %v135 = vld [vmem:[%s1 + $0x318] sm:$0xff]
  %v136 = vld [vmem:[%s1 + $0x320] sm:$0xff]
  %v137 = vld [vmem:[%s1 + $0x328] sm:$0xff]
  %v138 = vld [vmem:[%s1 + $0x330] sm:$0xff]
  %v139 = vld [vmem:[%s1 + $0x338] sm:$0xff]
  %v140 = vld [vmem:[%s1 + $0x340] sm:$0xff]
  %v141 = vld [vmem:[%s1 + $0x348] sm:$0xff]
  %v142 = vld [vmem:[%s1 + $0x350] sm:$0xff]
  %v143 = vld [vmem:[%s1 + $0x358] sm:$0xff]
  %v144 = vld [vmem:[%s1 + $0x360] sm:$0xff]
  %v145 = vld [vmem:[%s1 + $0x368] sm:$0xff]
  %v146 = vld [vmem:[%s1 + $0x370] sm:$0xff]
  %v147 = vld [vmem:[%s1 + $0x378] sm:$0xff]
  %v148 = vld [vmem:[%s1 + $0x380] sm:$0xff]
  %v149 = vld [vmem:[%s1 + $0x388] sm:$0xff]
  %v150 = vld [vmem:[%s1 + $0x390] sm:$0xff]
  %v151 = vld [vmem:[%s1 + $0x398] sm:$0xff]
  %v152 = vld [vmem:[%s1 + $0x3a0] sm:$0xff]
  %v153 = vld [vmem:[%s1 + $0x3a8] sm:$0xff]
  %v154 = vld [vmem:[%s1 + $0x3b0] sm:$0xff]
  %v155 = vld [vmem:[%s1 + $0x3b8] sm:$0xff]
  %v156 = vld [vmem:[%s1 + $0x3c0] sm:$0xff]
  %v157 = vld [vmem:[%s1 + $0x3c8] sm:$0xff]
  %v158 = vld [vmem:[%s1 + $0x3d0] sm:$0xff]
  %v159 = vld [vmem:[%s1 + $0x3d8] sm:$0xff]
  %v160 = vld [vmem:[%s1 + $0x3e0] sm:$0xff]
  %v161 = vld [vmem:[%s1 + $0x3e8] sm:$0xff]
  %v162 = vld [vmem:[%s1 + $0x3f0] sm:$0xff]
  %v163 = vld [vmem:[%s1 + $0x3f8] sm:$0xff]
  %v164 = vld [vmem:[%s1 + $0x400] sm:$0xff]
  %v165 = vld [vmem:[%s1 + $0x408] sm:$0xff]
  %v166 = vld [vmem:[%s1 + $0x410] sm:$0xff]
  %v167 = vld [vmem:[%s1 + $0x418] sm:$0xff]
  %v168 = vld [vmem:[%s1 + $0x420] sm:$0xff]
  %v169 = vld [vmem:[%s1 + $0x428] sm:$0xff]
  %v170 = vld [vmem:[%s1 + $0x430] sm:$0xff]
  %v171 = vld [vmem:[%s1 + $0x438] sm:$0xff]
  %v172 = vld [vmem:[%s1 + $0x440] sm:$0xff]
  %v173 = vld [vmem:[%s1 + $0x448] sm:$0xff]
  %v174 = vld [vmem:[%s1 + $0x450] sm:$0xff]
  %v175 = vld [vmem:[%s1 + $0x458] sm:$0xff]
  %v176 = vld [vmem:[%s1 + $0x460] sm:$0xff]
  %v177 = vld [vmem:[%s1 + $0x468] sm:$0xff]
  %v178 = vld [vmem:[%s1 + $0x470] sm:$0xff]
  %v179 = vld [vmem:[%s1 + $0x478] sm:$0xff]
  %v180 = vld [vmem:[%s1 + $0x480] sm:$0xff]
  %v181 = vld [vmem:[%s1 + $0x488] sm:$0xff]
  %v182 = vld [vmem:[%s1 + $0x490] sm:$0xff]
  %v183 = vld [vmem:[%s1 + $0x498] sm:$0xff]
  %v184 = vld [vmem:[%s1 + $0x4a0] sm:$0xff]
  %v185 = vld [vmem:[%s1 + $0x4a8] sm:$0xff]
  %v186 = vld [vmem:[%s1 + $0x4b0] sm:$0xff]
  %v187 = vld [vmem:[%s1 + $0x4b8] sm:$0xff]
  %v188 = vld [vmem:[%s1 + $0x4c0] sm:$0xff]
  %v189 = vld [vmem:[%s1 + $0x4c8] sm:$0xff]
  %v190 = vld [vmem:[%s1 + $0x4d0] sm:$0xff]
  %v191 = vld [vmem:[%s1 + $0x4d8] sm:$0xff]
  %v192 = vld [vmem:[%s1 + $0x4e0] sm:$0xff]
  %v193 = vld [vmem:[%s1 + $0x4e8] sm:$0xff]
  %v194 = vld [vmem:[%s1 + $0x4f0] sm:$0xff]
  %v195 = vld [vmem:[%s1 + $0x4f8] sm:$0xff]
  %v196 = vld [vmem:[%s1 + $0x500] sm:$0xff]
  %v197 = vld [vmem:[%s1 + $0x508] sm:$0xff]
  %v198 = vld [vmem:[%s1 + $0x510] sm:$0xff]
  %v199 = vld [vmem:[%s1 + $0x518] sm:$0xff]
  %v200 = vld [vmem:[%s1 + $0x520] sm:$0xff]
  %v201 = vld [vmem:[%s1 + $0x528] sm:$0xff]
  %v202 = vld [vmem:[%s1 + $0x530] sm:$0xff]
  %v203 = vld [vmem:[%s1 + $0x538] sm:$0xff]
  %v204 = vld [vmem:[%s1 + $0x540] sm:$0xff]
  %v205 = vld [vmem:[%s1 + $0x548] sm:$0xff]
  %v206 = vld [vmem:[%s1 + $0x550] sm:$0xff]
  %v207 = vld [vmem:[%s1 + $0x558] sm:$0xff]
  %v208 = vld [vmem:[%s1 + $0x560] sm:$0xff]
  %v209 = vld [vmem:[%s1 + $0x568] sm:$0xff]
  %v210 = vld [vmem:[%s1 + $0x570] sm:$0xff]
  %v211 = vld [vmem:[%s1 + $0x578] sm:$0xff]
  %v212 = vld [vmem:[%s1 + $0x580] sm:$0xff]
  %v213 = vld [vmem:[%s1 + $0x588] sm:$0xff]
  %v214 = vld [vmem:[%s1 + $0x590] sm:$0xff]
  %v215 = vld [vmem:[%s1 + $0x598] sm:$0xff]
  %v216 = vld [vmem:[%s1 + $0x5a0] sm:$0xff]
  %v217 = vld [vmem:[%s1 + $0x5a8] sm:$0xff]
  %v218 = vld [vmem:[%s1 + $0x5b0] sm:$0xff]
  %v219 = vld [vmem:[%s1 + $0x5b8] sm:$0xff]
  %v220 = vld [vmem:[%s1 + $0x5c0] sm:$0xff]
  %v221 = vld [vmem:[%s1 + $0x5c8] sm:$0xff]
  %v222 = vld [vmem:[%s1 + $0x5d0] sm:$0xff]
  %v223 = vld [vmem:[%s1 + $0x5d8] sm:$0xff]
  %v224 = vld [vmem:[%s1 + $0x5e0] sm:$0xff]
  %v225 = vld [vmem:[%s1 + $0x5e8] sm:$0xff]
  %v226 = vld [vmem:[%s1 + $0x5f0] sm:$0xff]
  %v227 = vld [vmem:[%s1 + $0x5f8] sm:$0xff]
  %v228 = vld [vmem:[%s2] sm:$0xf]
  %v230 = vlaneseq
  %v231 = vshrl.u32 %v230, 7
  %v232 = vsub.s32 0, %v231
  %v233 = vrot.slane %v228, %v232
  %v234 = vlaneseq
  %v235 = vshrl.u32 %v234, 7
  %v236 = vsub.s32 1, %v235
  %v237 = vrot.slane %v228, %v236
  %v238 = vlaneseq
  %v239 = vshrl.u32 %v238, 7
  %v240 = vsub.s32 2, %v239
  %v241 = vrot.slane %v228, %v240
  %v242 = vlaneseq
  %v243 = vshrl.u32 %v242, 7
  %v244 = vsub.s32 3, %v243
  %v245 = vrot.slane %v228, %v244
  %v253 = vunpack.c.l.b16 %v33
  %v254 = vunpack.c.h.b16 %v33
  %v255 = vunpack.c.l.b16 %v34
  %v256 = vunpack.c.h.b16 %v34
  %v257 = vunpack.c.l.b16 %v35
  %v258 = vunpack.c.h.b16 %v35
  %v259 = vpack.c.b16 %v253, %v253
  %v260 = vpack.c.b16 %v254, %v254
  %v261 = vpack.c.b16 %v255, %v255
  %v262 = vpack.c.b16 %v256, %v256
  %v263 = vpack.c.b16 %v257, %v257
  %v264 = vpack.c.b16 %v258, %v258
  %v463 = vunpack.c.l.b16 %v36
  %v464 = vunpack.c.h.b16 %v36
  %v465 = vunpack.c.l.b16 %v37
  %v466 = vunpack.c.h.b16 %v37
  %v467 = vunpack.c.l.b16 %v38
  %v468 = vunpack.c.h.b16 %v38
  %v469 = vunpack.c.l.b16 %v39
  %v470 = vunpack.c.h.b16 %v39
  %v471 = vunpack.c.l.b16 %v40
  %v472 = vunpack.c.h.b16 %v40
  %v473 = vunpack.c.l.b16 %v41
  %v474 = vunpack.c.h.b16 %v41
  %v475 = vunpack.c.l.b16 %v42
  %v476 = vunpack.c.h.b16 %v42
  %v477 = vunpack.c.l.b16 %v43
  %v478 = vunpack.c.h.b16 %v43
  %v479 = vunpack.c.l.b16 %v44
  %v480 = vunpack.c.h.b16 %v44
  %v481 = vunpack.c.l.b16 %v45
  %v482 = vunpack.c.h.b16 %v45
  %v483 = vunpack.c.l.b16 %v46
  %v484 = vunpack.c.h.b16 %v46
  %v485 = vunpack.c.l.b16 %v47
  %v486 = vunpack.c.h.b16 %v47
  %v487 = vunpack.c.l.b16 %v48
  %v488 = vunpack.c.h.b16 %v48
  %v489 = vunpack.c.l.b16 %v49
  %v490 = vunpack.c.h.b16 %v49
  %v491 = vunpack.c.l.b16 %v50
  %v492 = vunpack.c.h.b16 %v50
  %v493 = vunpack.c.l.b16 %v51
  %v494 = vunpack.c.h.b16 %v51
  %v495 = vunpack.c.l.b16 %v52
  %v496 = vunpack.c.h.b16 %v52
  %v497 = vunpack.c.l.b16 %v53
  %v498 = vunpack.c.h.b16 %v53
  %v499 = vunpack.c.l.b16 %v54
  %v500 = vunpack.c.h.b16 %v54
  %v501 = vunpack.c.l.b16 %v55
  %v502 = vunpack.c.h.b16 %v55
  %v503 = vunpack.c.l.b16 %v56
  %v504 = vunpack.c.h.b16 %v56
  %v505 = vunpack.c.l.b16 %v57
  %v506 = vunpack.c.h.b16 %v57
  %v507 = vunpack.c.l.b16 %v58
  %v508 = vunpack.c.h.b16 %v58
  %v509 = vunpack.c.l.b16 %v59
  %v510 = vunpack.c.h.b16 %v59
  %v511 = vunpack.c.l.b16 %v60
  %v512 = vunpack.c.h.b16 %v60
  %v513 = vunpack.c.l.b16 %v61
  %v514 = vunpack.c.h.b16 %v61
  %v515 = vunpack.c.l.b16 %v62
  %v516 = vunpack.c.h.b16 %v62
  %v517 = vunpack.c.l.b16 %v63
  %v518 = vunpack.c.h.b16 %v63
  %v519 = vunpack.c.l.b16 %v64
  %v520 = vunpack.c.h.b16 %v64
  %v521 = vunpack.c.l.b16 %v65
  %v522 = vunpack.c.h.b16 %v65
  %v523 = vunpack.c.l.b16 %v66
  %v524 = vunpack.c.h.b16 %v66
  %v525 = vunpack.c.l.b16 %v67
  %v526 = vunpack.c.h.b16 %v67
  %v527 = vunpack.c.l.b16 %v68
  %v528 = vunpack.c.h.b16 %v68
  %v529 = vunpack.c.l.b16 %v69
  %v530 = vunpack.c.h.b16 %v69
  %v531 = vunpack.c.l.b16 %v70
  %v532 = vunpack.c.h.b16 %v70
  %v533 = vunpack.c.l.b16 %v71
  %v534 = vunpack.c.h.b16 %v71
  %v535 = vunpack.c.l.b16 %v72
  %v536 = vunpack.c.h.b16 %v72
  %v537 = vunpack.c.l.b16 %v73
  %v538 = vunpack.c.h.b16 %v73
  %v539 = vunpack.c.l.b16 %v74
  %v540 = vunpack.c.h.b16 %v74
  %v541 = vunpack.c.l.b16 %v75
  %v542 = vunpack.c.h.b16 %v75
  %v543 = vunpack.c.l.b16 %v76
  %v544 = vunpack.c.h.b16 %v76
  %v545 = vunpack.c.l.b16 %v77
  %v546 = vunpack.c.h.b16 %v77
  %v547 = vunpack.c.l.b16 %v78
  %v548 = vunpack.c.h.b16 %v78
  %v549 = vunpack.c.l.b16 %v79
  %v550 = vunpack.c.h.b16 %v79
  %v551 = vunpack.c.l.b16 %v80
  %v552 = vunpack.c.h.b16 %v80
  %v553 = vunpack.c.l.b16 %v81
  %v554 = vunpack.c.h.b16 %v81
  %v555 = vunpack.c.l.b16 %v82
  %v556 = vunpack.c.h.b16 %v82
  %v557 = vunpack.c.l.b16 %v83
  %v558 = vunpack.c.h.b16 %v83
  %v559 = vunpack.c.l.b16 %v84
  %v560 = vunpack.c.h.b16 %v84
  %v561 = vunpack.c.l.b16 %v85
  %v562 = vunpack.c.h.b16 %v85
  %v563 = vunpack.c.l.b16 %v86
  %v564 = vunpack.c.h.b16 %v86
  %v565 = vunpack.c.l.b16 %v87
  %v566 = vunpack.c.h.b16 %v87
  %v567 = vunpack.c.l.b16 %v88
  %v568 = vunpack.c.h.b16 %v88
  %v569 = vunpack.c.l.b16 %v89
  %v570 = vunpack.c.h.b16 %v89
  %v571 = vunpack.c.l.b16 %v90
  %v572 = vunpack.c.h.b16 %v90
  %v573 = vunpack.c.l.b16 %v91
  %v574 = vunpack.c.h.b16 %v91
  %v575 = vunpack.c.l.b16 %v92
  %v576 = vunpack.c.h.b16 %v92
  %v577 = vunpack.c.l.b16 %v93
  %v578 = vunpack.c.h.b16 %v93
  %v579 = vunpack.c.l.b16 %v94
  %v580 = vunpack.c.h.b16 %v94
  %v581 = vunpack.c.l.b16 %v95
  %v582 = vunpack.c.h.b16 %v95
  %v583 = vunpack.c.l.b16 %v96
  %v584 = vunpack.c.h.b16 %v96
  %v585 = vunpack.c.l.b16 %v97
  %v586 = vunpack.c.h.b16 %v97
  %v587 = vunpack.c.l.b16 %v98
  %v588 = vunpack.c.h.b16 %v98
  %v589 = vunpack.c.l.b16 %v99
  %v590 = vunpack.c.h.b16 %v99
  %v591 = vunpack.c.l.b16 %v100
  %v592 = vunpack.c.h.b16 %v100
  %v593 = vunpack.c.l.b16 %v101
  %v594 = vunpack.c.h.b16 %v101
  %v595 = vunpack.c.l.b16 %v102
  %v596 = vunpack.c.h.b16 %v102
  %v597 = vunpack.c.l.b16 %v103
  %v598 = vunpack.c.h.b16 %v103
  %v599 = vunpack.c.l.b16 %v104
  %v600 = vunpack.c.h.b16 %v104
  %v601 = vunpack.c.l.b16 %v105
  %v602 = vunpack.c.h.b16 %v105
  %v603 = vunpack.c.l.b16 %v106
  %v604 = vunpack.c.h.b16 %v106
  %v605 = vunpack.c.l.b16 %v107
  %v606 = vunpack.c.h.b16 %v107
  %v607 = vunpack.c.l.b16 %v108
  %v608 = vunpack.c.h.b16 %v108
  %v609 = vunpack.c.l.b16 %v109
  %v610 = vunpack.c.h.b16 %v109
  %v611 = vunpack.c.l.b16 %v110
  %v612 = vunpack.c.h.b16 %v110
  %v613 = vunpack.c.l.b16 %v111
  %v614 = vunpack.c.h.b16 %v111
  %v615 = vunpack.c.l.b16 %v112
  %v616 = vunpack.c.h.b16 %v112
  %v617 = vunpack.c.l.b16 %v113
  %v618 = vunpack.c.h.b16 %v113
  %v619 = vunpack.c.l.b16 %v114
  %v620 = vunpack.c.h.b16 %v114
  %v621 = vunpack.c.l.b16 %v115
  %v622 = vunpack.c.h.b16 %v115
  %v623 = vunpack.c.l.b16 %v116
  %v624 = vunpack.c.h.b16 %v116
  %v625 = vunpack.c.l.b16 %v117
  %v626 = vunpack.c.h.b16 %v117
  %v627 = vunpack.c.l.b16 %v118
  %v628 = vunpack.c.h.b16 %v118
  %v629 = vunpack.c.l.b16 %v119
  %v630 = vunpack.c.h.b16 %v119
  %v631 = vunpack.c.l.b16 %v120
  %v632 = vunpack.c.h.b16 %v120
  %v633 = vunpack.c.l.b16 %v121
  %v634 = vunpack.c.h.b16 %v121
  %v635 = vunpack.c.l.b16 %v122
  %v636 = vunpack.c.h.b16 %v122
  %v637 = vunpack.c.l.b16 %v123
  %v638 = vunpack.c.h.b16 %v123
  %v639 = vunpack.c.l.b16 %v124
  %v640 = vunpack.c.h.b16 %v124
  %v641 = vunpack.c.l.b16 %v125
  %v642 = vunpack.c.h.b16 %v125
  %v643 = vunpack.c.l.b16 %v126
  %v644 = vunpack.c.h.b16 %v126
  %v645 = vunpack.c.l.b16 %v127
  %v646 = vunpack.c.h.b16 %v127
  %v647 = vunpack.c.l.b16 %v128
  %v648 = vunpack.c.h.b16 %v128
  %v649 = vunpack.c.l.b16 %v129
  %v650 = vunpack.c.h.b16 %v129
  %v651 = vunpack.c.l.b16 %v130
  %v652 = vunpack.c.h.b16 %v130
  %v653 = vunpack.c.l.b16 %v131
  %v654 = vunpack.c.h.b16 %v131
  %v655 = vunpack.c.l.b16 %v132
  %v656 = vunpack.c.h.b16 %v132
  %v657 = vunpack.c.l.b16 %v133
  %v658 = vunpack.c.h.b16 %v133
  %v659 = vunpack.c.l.b16 %v134
  %v660 = vunpack.c.h.b16 %v134
  %v661 = vunpack.c.l.b16 %v135
  %v662 = vunpack.c.h.b16 %v135
  %v663 = vunpack.c.l.b16 %v136
  %v664 = vunpack.c.h.b16 %v136
  %v665 = vunpack.c.l.b16 %v137
  %v666 = vunpack.c.h.b16 %v137
  %v667 = vunpack.c.l.b16 %v138
  %v668 = vunpack.c.h.b16 %v138
  %v669 = vunpack.c.l.b16 %v139
  %v670 = vunpack.c.h.b16 %v139
  %v671 = vunpack.c.l.b16 %v140
  %v672 = vunpack.c.h.b16 %v140
  %v673 = vunpack.c.l.b16 %v141
  %v674 = vunpack.c.h.b16 %v141
  %v675 = vunpack.c.l.b16 %v142
  %v676 = vunpack.c.h.b16 %v142
  %v677 = vunpack.c.l.b16 %v143
  %v678 = vunpack.c.h.b16 %v143
  %v679 = vunpack.c.l.b16 %v144
  %v680 = vunpack.c.h.b16 %v144
  %v681 = vunpack.c.l.b16 %v145
  %v682 = vunpack.c.h.b16 %v145
  %v683 = vunpack.c.l.b16 %v146
  %v684 = vunpack.c.h.b16 %v146
  %v685 = vunpack.c.l.b16 %v147
  %v686 = vunpack.c.h.b16 %v147
  %v687 = vunpack.c.l.b16 %v148
  %v688 = vunpack.c.h.b16 %v148
  %v689 = vunpack.c.l.b16 %v149
  %v690 = vunpack.c.h.b16 %v149
  %v691 = vunpack.c.l.b16 %v150
  %v692 = vunpack.c.h.b16 %v150
  %v693 = vunpack.c.l.b16 %v151
  %v694 = vunpack.c.h.b16 %v151
  %v695 = vunpack.c.l.b16 %v152
  %v696 = vunpack.c.h.b16 %v152
  %v697 = vunpack.c.l.b16 %v153
  %v698 = vunpack.c.h.b16 %v153
  %v699 = vunpack.c.l.b16 %v154
  %v700 = vunpack.c.h.b16 %v154
  %v701 = vunpack.c.l.b16 %v155
  %v702 = vunpack.c.h.b16 %v155
  %v703 = vunpack.c.l.b16 %v156
  %v704 = vunpack.c.h.b16 %v156
  %v705 = vunpack.c.l.b16 %v157
  %v706 = vunpack.c.h.b16 %v157
  %v707 = vunpack.c.l.b16 %v158
  %v708 = vunpack.c.h.b16 %v158
  %v709 = vunpack.c.l.b16 %v159
  %v710 = vunpack.c.h.b16 %v159
  %v711 = vunpack.c.l.b16 %v160
  %v712 = vunpack.c.h.b16 %v160
  %v713 = vunpack.c.l.b16 %v161
  %v714 = vunpack.c.h.b16 %v161
  %v715 = vunpack.c.l.b16 %v162
  %v716 = vunpack.c.h.b16 %v162
  %v717 = vunpack.c.l.b16 %v163
  %v718 = vunpack.c.h.b16 %v163
  %v719 = vunpack.c.l.b16 %v164
  %v720 = vunpack.c.h.b16 %v164
  %v721 = vunpack.c.l.b16 %v165
  %v722 = vunpack.c.h.b16 %v165
  %v723 = vunpack.c.l.b16 %v166
  %v724 = vunpack.c.h.b16 %v166
  %v725 = vunpack.c.l.b16 %v167
  %v726 = vunpack.c.h.b16 %v167
  %v727 = vunpack.c.l.b16 %v168
  %v728 = vunpack.c.h.b16 %v168
  %v729 = vunpack.c.l.b16 %v169
  %v730 = vunpack.c.h.b16 %v169
  %v731 = vunpack.c.l.b16 %v170
  %v732 = vunpack.c.h.b16 %v170
  %v733 = vunpack.c.l.b16 %v171
  %v734 = vunpack.c.h.b16 %v171
  %v735 = vunpack.c.l.b16 %v172
  %v736 = vunpack.c.h.b16 %v172
  %v737 = vunpack.c.l.b16 %v173
  %v738 = vunpack.c.h.b16 %v173
  %v739 = vunpack.c.l.b16 %v174
  %v740 = vunpack.c.h.b16 %v174
  %v741 = vunpack.c.l.b16 %v175
  %v742 = vunpack.c.h.b16 %v175
  %v743 = vunpack.c.l.b16 %v176
  %v744 = vunpack.c.h.b16 %v176
  %v745 = vunpack.c.l.b16 %v177
  %v746 = vunpack.c.h.b16 %v177
  %v747 = vunpack.c.l.b16 %v178
  %v748 = vunpack.c.h.b16 %v178
  %v749 = vunpack.c.l.b16 %v179
  %v750 = vunpack.c.h.b16 %v179
  %v751 = vunpack.c.l.b16 %v180
  %v752 = vunpack.c.h.b16 %v180
  %v753 = vunpack.c.l.b16 %v181
  %v754 = vunpack.c.h.b16 %v181
  %v755 = vunpack.c.l.b16 %v182
  %v756 = vunpack.c.h.b16 %v182
  %v757 = vunpack.c.l.b16 %v183
  %v758 = vunpack.c.h.b16 %v183
  %v759 = vunpack.c.l.b16 %v184
  %v760 = vunpack.c.h.b16 %v184
  %v761 = vunpack.c.l.b16 %v185
  %v762 = vunpack.c.h.b16 %v185
  %v763 = vunpack.c.l.b16 %v186
  %v764 = vunpack.c.h.b16 %v186
  %v765 = vunpack.c.l.b16 %v187
  %v766 = vunpack.c.h.b16 %v187
  %v767 = vunpack.c.l.b16 %v188
  %v768 = vunpack.c.h.b16 %v188
  %v769 = vunpack.c.l.b16 %v189
  %v770 = vunpack.c.h.b16 %v189
  %v771 = vunpack.c.l.b16 %v190
  %v772 = vunpack.c.h.b16 %v190
  %v773 = vunpack.c.l.b16 %v191
  %v774 = vunpack.c.h.b16 %v191
  %v775 = vunpack.c.l.b16 %v192
  %v776 = vunpack.c.h.b16 %v192
  %v777 = vunpack.c.l.b16 %v193
  %v778 = vunpack.c.h.b16 %v193
  %v779 = vunpack.c.l.b16 %v194
  %v780 = vunpack.c.h.b16 %v194
  %v781 = vunpack.c.l.b16 %v195
  %v782 = vunpack.c.h.b16 %v195
  %v783 = vunpack.c.l.b16 %v196
  %v784 = vunpack.c.h.b16 %v196
  %v785 = vunpack.c.l.b16 %v197
  %v786 = vunpack.c.h.b16 %v197
  %v787 = vunpack.c.l.b16 %v198
  %v788 = vunpack.c.h.b16 %v198
  %v789 = vunpack.c.l.b16 %v199
  %v790 = vunpack.c.h.b16 %v199
  %v791 = vunpack.c.l.b16 %v200
  %v792 = vunpack.c.h.b16 %v200
  %v793 = vunpack.c.l.b16 %v201
  %v794 = vunpack.c.h.b16 %v201
  %v795 = vunpack.c.l.b16 %v202
  %v796 = vunpack.c.h.b16 %v202
  %v797 = vunpack.c.l.b16 %v203
  %v798 = vunpack.c.h.b16 %v203
  %v799 = vunpack.c.l.b16 %v204
  %v800 = vunpack.c.h.b16 %v204
  %v801 = vunpack.c.l.b16 %v205
  %v802 = vunpack.c.h.b16 %v205
  %v803 = vunpack.c.l.b16 %v206
  %v804 = vunpack.c.h.b16 %v206
  %v805 = vunpack.c.l.b16 %v207
  %v806 = vunpack.c.h.b16 %v207
  %v807 = vunpack.c.l.b16 %v208
  %v808 = vunpack.c.h.b16 %v208
  %v809 = vunpack.c.l.b16 %v209
  %v810 = vunpack.c.h.b16 %v209
  %v811 = vunpack.c.l.b16 %v210
  %v812 = vunpack.c.h.b16 %v210
  %v813 = vunpack.c.l.b16 %v211
  %v814 = vunpack.c.h.b16 %v211
  %v815 = vunpack.c.l.b16 %v212
  %v816 = vunpack.c.h.b16 %v212
  %v817 = vunpack.c.l.b16 %v213
  %v818 = vunpack.c.h.b16 %v213
  %v819 = vunpack.c.l.b16 %v214
  %v820 = vunpack.c.h.b16 %v214
  %v821 = vunpack.c.l.b16 %v215
  %v822 = vunpack.c.h.b16 %v215
  %v823 = vunpack.c.l.b16 %v216
  %v824 = vunpack.c.h.b16 %v216
  %v825 = vunpack.c.l.b16 %v217
  %v826 = vunpack.c.h.b16 %v217
  %v827 = vunpack.c.l.b16 %v218
  %v828 = vunpack.c.h.b16 %v218
  %v829 = vunpack.c.l.b16 %v219
  %v830 = vunpack.c.h.b16 %v219
  %v831 = vunpack.c.l.b16 %v220
  %v832 = vunpack.c.h.b16 %v220
  %v833 = vunpack.c.l.b16 %v221
  %v834 = vunpack.c.h.b16 %v221
  %v835 = vunpack.c.l.b16 %v222
  %v836 = vunpack.c.h.b16 %v222
  %v837 = vunpack.c.l.b16 %v223
  %v838 = vunpack.c.h.b16 %v223
  %v839 = vunpack.c.l.b16 %v224
  %v840 = vunpack.c.h.b16 %v224
  %v841 = vunpack.c.l.b16 %v225
  %v842 = vunpack.c.h.b16 %v225
  %v843 = vunpack.c.l.b16 %v226
  %v844 = vunpack.c.h.b16 %v226
  %v845 = vunpack.c.l.b16 %v227
  %v846 = vunpack.c.h.b16 %v227
  %v847 = vpack.c.b16 %v467, %v463
  %v848 = vpack.c.b16 %v468, %v464
  %v849 = vpack.c.b16 %v469, %v465
  %v850 = vpack.c.b16 %v470, %v466
  %v851 = vpack.c.b16 %v475, %v471
  %v852 = vpack.c.b16 %v476, %v472
  %v853 = vpack.c.b16 %v477, %v473
  %v854 = vpack.c.b16 %v478, %v474
  %v855 = vpack.c.b16 %v483, %v479
  %v856 = vpack.c.b16 %v484, %v480
  %v857 = vpack.c.b16 %v485, %v481
  %v858 = vpack.c.b16 %v486, %v482
  %v859 = vpack.c.b16 %v491, %v487
  %v860 = vpack.c.b16 %v492, %v488
  %v861 = vpack.c.b16 %v493, %v489
  %v862 = vpack.c.b16 %v494, %v490
  %v863 = vpack.c.b16 %v499, %v495
  %v864 = vpack.c.b16 %v500, %v496
  %v865 = vpack.c.b16 %v501, %v497
  %v866 = vpack.c.b16 %v502, %v498
  %v867 = vpack.c.b16 %v507, %v503
  %v868 = vpack.c.b16 %v508, %v504
  %v869 = vpack.c.b16 %v509, %v505
  %v870 = vpack.c.b16 %v510, %v506
  %v871 = vpack.c.b16 %v515, %v511
  %v872 = vpack.c.b16 %v516, %v512
  %v873 = vpack.c.b16 %v517, %v513
  %v874 = vpack.c.b16 %v518, %v514
  %v875 = vpack.c.b16 %v523, %v519
  %v876 = vpack.c.b16 %v524, %v520
  %v877 = vpack.c.b16 %v525, %v521
  %v878 = vpack.c.b16 %v526, %v522
  %v879 = vpack.c.b16 %v531, %v527
  %v880 = vpack.c.b16 %v532, %v528
  %v881 = vpack.c.b16 %v533, %v529
  %v882 = vpack.c.b16 %v534, %v530
  %v883 = vpack.c.b16 %v539, %v535
  %v884 = vpack.c.b16 %v540, %v536
  %v885 = vpack.c.b16 %v541, %v537
  %v886 = vpack.c.b16 %v542, %v538
  %v887 = vpack.c.b16 %v547, %v543
  %v888 = vpack.c.b16 %v548, %v544
  %v889 = vpack.c.b16 %v549, %v545
  %v890 = vpack.c.b16 %v550, %v546
  %v891 = vpack.c.b16 %v555, %v551
  %v892 = vpack.c.b16 %v556, %v552
  %v893 = vpack.c.b16 %v557, %v553
  %v894 = vpack.c.b16 %v558, %v554
  %v895 = vpack.c.b16 %v563, %v559
  %v896 = vpack.c.b16 %v564, %v560
  %v897 = vpack.c.b16 %v565, %v561
  %v898 = vpack.c.b16 %v566, %v562
  %v899 = vpack.c.b16 %v571, %v567
  %v900 = vpack.c.b16 %v572, %v568
  %v901 = vpack.c.b16 %v573, %v569
  %v902 = vpack.c.b16 %v574, %v570
  %v903 = vpack.c.b16 %v579, %v575
  %v904 = vpack.c.b16 %v580, %v576
  %v905 = vpack.c.b16 %v581, %v577
  %v906 = vpack.c.b16 %v582, %v578
  %v907 = vpack.c.b16 %v587, %v583
  %v908 = vpack.c.b16 %v588, %v584
  %v909 = vpack.c.b16 %v589, %v585
  %v910 = vpack.c.b16 %v590, %v586
  %v911 = vpack.c.b16 %v595, %v591
  %v912 = vpack.c.b16 %v596, %v592
  %v913 = vpack.c.b16 %v597, %v593
  %v914 = vpack.c.b16 %v598, %v594
  %v915 = vpack.c.b16 %v603, %v599
  %v916 = vpack.c.b16 %v604, %v600
  %v917 = vpack.c.b16 %v605, %v601
  %v918 = vpack.c.b16 %v606, %v602
  %v919 = vpack.c.b16 %v611, %v607
  %v920 = vpack.c.b16 %v612, %v608
  %v921 = vpack.c.b16 %v613, %v609
  %v922 = vpack.c.b16 %v614, %v610
  %v923 = vpack.c.b16 %v619, %v615
  %v924 = vpack.c.b16 %v620, %v616
  %v925 = vpack.c.b16 %v621, %v617
  %v926 = vpack.c.b16 %v622, %v618
  %v927 = vpack.c.b16 %v627, %v623
  %v928 = vpack.c.b16 %v628, %v624
  %v929 = vpack.c.b16 %v629, %v625
  %v930 = vpack.c.b16 %v630, %v626
  %v931 = vpack.c.b16 %v635, %v631
  %v932 = vpack.c.b16 %v636, %v632
  %v933 = vpack.c.b16 %v637, %v633
  %v934 = vpack.c.b16 %v638, %v634
  %v935 = vpack.c.b16 %v643, %v639
  %v936 = vpack.c.b16 %v644, %v640
  %v937 = vpack.c.b16 %v645, %v641
  %v938 = vpack.c.b16 %v646, %v642
  %v939 = vpack.c.b16 %v651, %v647
  %v940 = vpack.c.b16 %v652, %v648
  %v941 = vpack.c.b16 %v653, %v649
  %v942 = vpack.c.b16 %v654, %v650
  %v943 = vpack.c.b16 %v659, %v655
  %v944 = vpack.c.b16 %v660, %v656
  %v945 = vpack.c.b16 %v661, %v657
  %v946 = vpack.c.b16 %v662, %v658
  %v947 = vpack.c.b16 %v667, %v663
  %v948 = vpack.c.b16 %v668, %v664
  %v949 = vpack.c.b16 %v669, %v665
  %v950 = vpack.c.b16 %v670, %v666
  %v951 = vpack.c.b16 %v675, %v671
  %v952 = vpack.c.b16 %v676, %v672
  %v953 = vpack.c.b16 %v677, %v673
  %v954 = vpack.c.b16 %v678, %v674
  %v955 = vpack.c.b16 %v683, %v679
  %v956 = vpack.c.b16 %v684, %v680
  %v957 = vpack.c.b16 %v685, %v681
  %v958 = vpack.c.b16 %v686, %v682
  %v959 = vpack.c.b16 %v691, %v687
  %v960 = vpack.c.b16 %v692, %v688
  %v961 = vpack.c.b16 %v693, %v689
  %v962 = vpack.c.b16 %v694, %v690
  %v963 = vpack.c.b16 %v699, %v695
  %v964 = vpack.c.b16 %v700, %v696
  %v965 = vpack.c.b16 %v701, %v697
  %v966 = vpack.c.b16 %v702, %v698
  %v967 = vpack.c.b16 %v707, %v703
  %v968 = vpack.c.b16 %v708, %v704
  %v969 = vpack.c.b16 %v709, %v705
  %v970 = vpack.c.b16 %v710, %v706
  %v971 = vpack.c.b16 %v715, %v711
  %v972 = vpack.c.b16 %v716, %v712
  %v973 = vpack.c.b16 %v717, %v713
  %v974 = vpack.c.b16 %v718, %v714
  %v975 = vpack.c.b16 %v723, %v719
  %v976 = vpack.c.b16 %v724, %v720
  %v977 = vpack.c.b16 %v725, %v721
  %v978 = vpack.c.b16 %v726, %v722
  %v979 = vpack.c.b16 %v731, %v727
  %v980 = vpack.c.b16 %v732, %v728
  %v981 = vpack.c.b16 %v733, %v729
  %v982 = vpack.c.b16 %v734, %v730
  %v983 = vpack.c.b16 %v739, %v735
  %v984 = vpack.c.b16 %v740, %v736
  %v985 = vpack.c.b16 %v741, %v737
  %v986 = vpack.c.b16 %v742, %v738
  %v987 = vpack.c.b16 %v747, %v743
  %v988 = vpack.c.b16 %v748, %v744
  %v989 = vpack.c.b16 %v749, %v745
  %v990 = vpack.c.b16 %v750, %v746
  %v991 = vpack.c.b16 %v755, %v751
  %v992 = vpack.c.b16 %v756, %v752
  %v993 = vpack.c.b16 %v757, %v753
  %v994 = vpack.c.b16 %v758, %v754
  %v995 = vpack.c.b16 %v763, %v759
  %v996 = vpack.c.b16 %v764, %v760
  %v997 = vpack.c.b16 %v765, %v761
  %v998 = vpack.c.b16 %v766, %v762
  %v999 = vpack.c.b16 %v771, %v767
  %v1000 = vpack.c.b16 %v772, %v768
  %v1001 = vpack.c.b16 %v773, %v769
  %v1002 = vpack.c.b16 %v774, %v770
  %v1003 = vpack.c.b16 %v779, %v775
  %v1004 = vpack.c.b16 %v780, %v776
  %v1005 = vpack.c.b16 %v781, %v777
  %v1006 = vpack.c.b16 %v782, %v778
  %v1007 = vpack.c.b16 %v787, %v783
  %v1008 = vpack.c.b16 %v788, %v784
  %v1009 = vpack.c.b16 %v789, %v785
  %v1010 = vpack.c.b16 %v790, %v786
  %v1011 = vpack.c.b16 %v795, %v791
  %v1012 = vpack.c.b16 %v796, %v792
  %v1013 = vpack.c.b16 %v797, %v793
  %v1014 = vpack.c.b16 %v798, %v794
  %v1015 = vpack.c.b16 %v803, %v799
  %v1016 = vpack.c.b16 %v804, %v800
  %v1017 = vpack.c.b16 %v805, %v801
  %v1018 = vpack.c.b16 %v806, %v802
  %v1019 = vpack.c.b16 %v811, %v807
  %v1020 = vpack.c.b16 %v812, %v808
  %v1021 = vpack.c.b16 %v813, %v809
  %v1022 = vpack.c.b16 %v814, %v810
  %v1023 = vpack.c.b16 %v819, %v815
  %v1024 = vpack.c.b16 %v820, %v816
  %v1025 = vpack.c.b16 %v821, %v817
  %v1026 = vpack.c.b16 %v822, %v818
  %v1027 = vpack.c.b16 %v827, %v823
  %v1028 = vpack.c.b16 %v828, %v824
  %v1029 = vpack.c.b16 %v829, %v825
  %v1030 = vpack.c.b16 %v830, %v826
  %v1031 = vpack.c.b16 %v835, %v831
  %v1032 = vpack.c.b16 %v836, %v832
  %v1033 = vpack.c.b16 %v837, %v833
  %v1034 = vpack.c.b16 %v838, %v834
  %v1035 = vpack.c.b16 %v843, %v839
  %v1036 = vpack.c.b16 %v844, %v840
  %v1037 = vpack.c.b16 %v845, %v841
  %v1038 = vpack.c.b16 %v846, %v842
  %1231 = vmatprep.subr.bf16.mxu0 %v876
  %1232 = vmatpush1.bf16.msra.mxu0 %v875
  %1233 = vmatprep.subr.bf16.mxu0 %v872
  %1234 = vmatpush1.bf16.msra.mxu0 %v871
  %1235 = vmatprep.subr.bf16.mxu0 %v868
  %1236 = vmatpush1.bf16.msra.mxu0 %v867
  %1237 = vmatprep.subr.bf16.mxu0 %v864
  %1238 = vmatpush1.bf16.msra.mxu0 %v863
  %1239 = vmatprep.subr.bf16.mxu0 %v860
  %1240 = vmatpush1.bf16.msra.mxu0 %v859
  %1241 = vmatprep.subr.bf16.mxu0 %v856
  %1242 = vmatpush1.bf16.msra.mxu0 %v855
  %1243 = vmatprep.subr.bf16.mxu0 %v852
  %1244 = vmatpush1.bf16.msra.mxu0 %v851
  %1245 = vmatprep.subr.bf16.mxu0 %v848
  %1246 = vmatpush1.bf16.msra.mxu0 %v847
  %1247 = vmatprep.subr.bf16.mxu0 %v908
  %1248 = vmatpush2.bf16.msra.mxu0 %v907
  %1249 = vmatprep.subr.bf16.mxu0 %v904
  %1250 = vmatpush2.bf16.msra.mxu0 %v903
  %1251 = vmatprep.subr.bf16.mxu0 %v900
  %1252 = vmatpush2.bf16.msra.mxu0 %v899
  %1253 = vmatprep.subr.bf16.mxu0 %v896
  %1254 = vmatpush2.bf16.msra.mxu0 %v895
  %1255 = vmatprep.subr.bf16.mxu0 %v892
  %1256 = vmatpush2.bf16.msra.mxu0 %v891
  %1257 = vmatprep.subr.bf16.mxu0 %v888
  %1258 = vmatpush2.bf16.msra.mxu0 %v887
  %1259 = vmatprep.subr.bf16.mxu0 %v884
  %1260 = vmatpush2.bf16.msra.mxu0 %v883
  %1261 = vmatprep.subr.bf16.mxu0 %v880
  %1262 = vmatpush2.bf16.msra.mxu0 %v879
  %1263 = vmatprep.mubr.bf16.mxu0 %v260
  %1264 = vmatmul.mubr.bf16.gmra.mxu0 %v259
  %v1265 = vpop.f32.mrf.mxu0
  %v1266 = vadd.f32 %v233, %v1265
  %v1267 = vpop.f32.mrf.mxu0
  %v1268 = vadd.f32 %v237, %v1267
  %v1269 = vpop.f32.mrf.mxu0
  %v1270 = vpop.f32.mrf.mxu0
  %1271 = vdwg.mxu0
  %1272 = vmatprep.subr.bf16.mxu0 %v940
  %1273 = vmatpush1.bf16.msra.mxu0 %v939
  %1274 = vmatprep.subr.bf16.mxu0 %v936
  %1275 = vmatpush1.bf16.msra.mxu0 %v935
  %1276 = vmatprep.subr.bf16.mxu0 %v932
  %1277 = vmatpush1.bf16.msra.mxu0 %v931
  %1278 = vmatprep.subr.bf16.mxu0 %v928
  %1279 = vmatpush1.bf16.msra.mxu0 %v927
  %1280 = vmatprep.subr.bf16.mxu0 %v924
  %1281 = vmatpush1.bf16.msra.mxu0 %v923
  %1282 = vmatprep.subr.bf16.mxu0 %v920
  %1283 = vmatpush1.bf16.msra.mxu0 %v919
  %1284 = vmatprep.subr.bf16.mxu0 %v916
  %1285 = vmatpush1.bf16.msra.mxu0 %v915
  %1286 = vmatprep.subr.bf16.mxu0 %v912
  %1287 = vmatpush1.bf16.msra.mxu0 %v911
  %1288 = vmatprep.subr.bf16.mxu0 %v972
  %1289 = vmatpush2.bf16.msra.mxu0 %v971
  %1290 = vmatprep.subr.bf16.mxu0 %v968
  %1291 = vmatpush2.bf16.msra.mxu0 %v967
  %1292 = vmatprep.subr.bf16.mxu0 %v964
  %1293 = vmatpush2.bf16.msra.mxu0 %v963
  %1294 = vmatprep.subr.bf16.mxu0 %v960
  %1295 = vmatpush2.bf16.msra.mxu0 %v959
  %1296 = vmatprep.subr.bf16.mxu0 %v956
  %1297 = vmatpush2.bf16.msra.mxu0 %v955
  %1298 = vmatprep.subr.bf16.mxu0 %v952
  %1299 = vmatpush2.bf16.msra.mxu0 %v951
  %1300 = vmatprep.subr.bf16.mxu0 %v948
  %1301 = vmatpush2.bf16.msra.mxu0 %v947
  %1302 = vmatprep.subr.bf16.mxu0 %v944
  %1303 = vmatpush2.bf16.msra.mxu0 %v943
  %1304 = vmatprep.mubr.bf16.mxu0 %v262
  %1305 = vmatmul.mubr.bf16.gmra.mxu0 %v261
  %v1306 = vpop.f32.mrf.mxu0
  %v1307 = vadd.f32 %v1266, %v1306
  %v1308 = vpop.f32.mrf.mxu0
  %v1309 = vadd.f32 %v1268, %v1308
  %v1310 = vpop.f32.mrf.mxu0
  %v1311 = vpop.f32.mrf.mxu0
  %1312 = vdwg.mxu0
  %1313 = vmatprep.subr.bf16.mxu0 %v1004
  %1314 = vmatpush1.bf16.msra.mxu0 %v1003
  %1315 = vmatprep.subr.bf16.mxu0 %v1000
  %1316 = vmatpush1.bf16.msra.mxu0 %v999
  %1317 = vmatprep.subr.bf16.mxu0 %v996
  %1318 = vmatpush1.bf16.msra.mxu0 %v995
  %1319 = vmatprep.subr.bf16.mxu0 %v992
  %1320 = vmatpush1.bf16.msra.mxu0 %v991
  %1321 = vmatprep.subr.bf16.mxu0 %v988
  %1322 = vmatpush1.bf16.msra.mxu0 %v987
  %1323 = vmatprep.subr.bf16.mxu0 %v984
  %1324 = vmatpush1.bf16.msra.mxu0 %v983
  %1325 = vmatprep.subr.bf16.mxu0 %v980
  %1326 = vmatpush1.bf16.msra.mxu0 %v979
  %1327 = vmatprep.subr.bf16.mxu0 %v976
  %1328 = vmatpush1.bf16.msra.mxu0 %v975
  %1329 = vmatprep.subr.bf16.mxu0 %v1036
  %1330 = vmatpush2.bf16.msra.mxu0 %v1035
  %1331 = vmatprep.subr.bf16.mxu0 %v1032
  %1332 = vmatpush2.bf16.msra.mxu0 %v1031
  %1333 = vmatprep.subr.bf16.mxu0 %v1028
  %1334 = vmatpush2.bf16.msra.mxu0 %v1027
  %1335 = vmatprep.subr.bf16.mxu0 %v1024
  %1336 = vmatpush2.bf16.msra.mxu0 %v1023
  %1337 = vmatprep.subr.bf16.mxu0 %v1020
  %1338 = vmatpush2.bf16.msra.mxu0 %v1019
  %1339 = vmatprep.subr.bf16.mxu0 %v1016
  %1340 = vmatpush2.bf16.msra.mxu0 %v1015
  %1341 = vmatprep.subr.bf16.mxu0 %v1012
  %1342 = vmatpush2.bf16.msra.mxu0 %v1011
  %1343 = vmatprep.subr.bf16.mxu0 %v1008
  %1344 = vmatpush2.bf16.msra.mxu0 %v1007
  %1345 = vmatprep.mubr.bf16.mxu0 %v264
  %1346 = vmatmul.mubr.bf16.gmra.mxu0 %v263
  %v1347 = vpop.f32.mrf.mxu0
  %v1348 = vadd.f32 %v1307, %v1347
  %v1349 = vpop.f32.mrf.mxu0
  %v1350 = vadd.f32 %v1309, %v1349
  %v1351 = vpop.f32.mrf.mxu0
  %v1352 = vpop.f32.mrf.mxu0
  %1353 = vdwg.mxu0
  %1354 = vmatprep.subr.bf16.mxu0 %v878
  %1355 = vmatpush1.bf16.msra.mxu0 %v877
  %1356 = vmatprep.subr.bf16.mxu0 %v874
  %1357 = vmatpush1.bf16.msra.mxu0 %v873
  %1358 = vmatprep.subr.bf16.mxu0 %v870
  %1359 = vmatpush1.bf16.msra.mxu0 %v869
  %1360 = vmatprep.subr.bf16.mxu0 %v866
  %1361 = vmatpush1.bf16.msra.mxu0 %v865
  %1362 = vmatprep.subr.bf16.mxu0 %v862
  %1363 = vmatpush1.bf16.msra.mxu0 %v861
  %1364 = vmatprep.subr.bf16.mxu0 %v858
  %1365 = vmatpush1.bf16.msra.mxu0 %v857
  %1366 = vmatprep.subr.bf16.mxu0 %v854
  %1367 = vmatpush1.bf16.msra.mxu0 %v853
  %1368 = vmatprep.subr.bf16.mxu0 %v850
  %1369 = vmatpush1.bf16.msra.mxu0 %v849
  %1370 = vmatprep.subr.bf16.mxu0 %v910
  %1371 = vmatpush2.bf16.msra.mxu0 %v909
  %1372 = vmatprep.subr.bf16.mxu0 %v906
  %1373 = vmatpush2.bf16.msra.mxu0 %v905
  %1374 = vmatprep.subr.bf16.mxu0 %v902
  %1375 = vmatpush2.bf16.msra.mxu0 %v901
  %1376 = vmatprep.subr.bf16.mxu0 %v898
  %1377 = vmatpush2.bf16.msra.mxu0 %v897
  %1378 = vmatprep.subr.bf16.mxu0 %v894
  %1379 = vmatpush2.bf16.msra.mxu0 %v893
  %1380 = vmatprep.subr.bf16.mxu0 %v890
  %1381 = vmatpush2.bf16.msra.mxu0 %v889
  %1382 = vmatprep.subr.bf16.mxu0 %v886
  %1383 = vmatpush2.bf16.msra.mxu0 %v885
  %1384 = vmatprep.subr.bf16.mxu0 %v882
  %1385 = vmatpush2.bf16.msra.mxu0 %v881
  %1386 = vmatprep.mubr.bf16.mxu0 %v260
  %1387 = vmatmul.mubr.bf16.gmra.mxu0 %v259
  %v1388 = vpop.f32.mrf.mxu0
  %v1389 = vadd.f32 %v241, %v1388
  %v1390 = vpop.f32.mrf.mxu0
  %v1391 = vadd.f32 %v245, %v1390
  %v1392 = vpop.f32.mrf.mxu0
  %v1393 = vpop.f32.mrf.mxu0
  %1394 = vdwg.mxu0
  %1395 = vmatprep.subr.bf16.mxu0 %v942
  %1396 = vmatpush1.bf16.msra.mxu0 %v941
  %1397 = vmatprep.subr.bf16.mxu0 %v938
  %1398 = vmatpush1.bf16.msra.mxu0 %v937
  %1399 = vmatprep.subr.bf16.mxu0 %v934
  %1400 = vmatpush1.bf16.msra.mxu0 %v933
  %1401 = vmatprep.subr.bf16.mxu0 %v930
  %1402 = vmatpush1.bf16.msra.mxu0 %v929
  %1403 = vmatprep.subr.bf16.mxu0 %v926
  %1404 = vmatpush1.bf16.msra.mxu0 %v925
  %1405 = vmatprep.subr.bf16.mxu0 %v922
  %1406 = vmatpush1.bf16.msra.mxu0 %v921
  %1407 = vmatprep.subr.bf16.mxu0 %v918
  %1408 = vmatpush1.bf16.msra.mxu0 %v917
  %1409 = vmatprep.subr.bf16.mxu0 %v914
  %1410 = vmatpush1.bf16.msra.mxu0 %v913
  %1411 = vmatprep.subr.bf16.mxu0 %v974
  %1412 = vmatpush2.bf16.msra.mxu0 %v973
  %1413 = vmatprep.subr.bf16.mxu0 %v970
  %1414 = vmatpush2.bf16.msra.mxu0 %v969
  %1415 = vmatprep.subr.bf16.mxu0 %v966
  %1416 = vmatpush2.bf16.msra.mxu0 %v965
  %1417 = vmatprep.subr.bf16.mxu0 %v962
  %1418 = vmatpush2.bf16.msra.mxu0 %v961
  %1419 = vmatprep.subr.bf16.mxu0 %v958
  %1420 = vmatpush2.bf16.msra.mxu0 %v957
  %1421 = vmatprep.subr.bf16.mxu0 %v954
  %1422 = vmatpush2.bf16.msra.mxu0 %v953
  %1423 = vmatprep.subr.bf16.mxu0 %v950
  %1424 = vmatpush2.bf16.msra.mxu0 %v949
  %1425 = vmatprep.subr.bf16.mxu0 %v946
  %1426 = vmatpush2.bf16.msra.mxu0 %v945
  %1427 = vmatprep.mubr.bf16.mxu0 %v262
  %1428 = vmatmul.mubr.bf16.gmra.mxu0 %v261
  %v1429 = vpop.f32.mrf.mxu0
  %v1430 = vadd.f32 %v1389, %v1429
  %v1431 = vpop.f32.mrf.mxu0
  %v1432 = vadd.f32 %v1391, %v1431
  %v1433 = vpop.f32.mrf.mxu0
  %v1434 = vpop.f32.mrf.mxu0
  %1435 = vdwg.mxu0
  %1436 = vmatprep.subr.bf16.mxu0 %v1006
  %1437 = vmatpush1.bf16.msra.mxu0 %v1005
  %1438 = vmatprep.subr.bf16.mxu0 %v1002
  %1439 = vmatpush1.bf16.msra.mxu0 %v1001
  %1440 = vmatprep.subr.bf16.mxu0 %v998
  %1441 = vmatpush1.bf16.msra.mxu0 %v997
  %1442 = vmatprep.subr.bf16.mxu0 %v994
  %1443 = vmatpush1.bf16.msra.mxu0 %v993
  %1444 = vmatprep.subr.bf16.mxu0 %v990
  %1445 = vmatpush1.bf16.msra.mxu0 %v989
  %1446 = vmatprep.subr.bf16.mxu0 %v986
  %1447 = vmatpush1.bf16.msra.mxu0 %v985
  %1448 = vmatprep.subr.bf16.mxu0 %v982
  %1449 = vmatpush1.bf16.msra.mxu0 %v981
  %1450 = vmatprep.subr.bf16.mxu0 %v978
  %1451 = vmatpush1.bf16.msra.mxu0 %v977
  %1452 = vmatprep.subr.bf16.mxu0 %v1038
  %1453 = vmatpush2.bf16.msra.mxu0 %v1037
  %1454 = vmatprep.subr.bf16.mxu0 %v1034
  %1455 = vmatpush2.bf16.msra.mxu0 %v1033
  %1456 = vmatprep.subr.bf16.mxu0 %v1030
  %1457 = vmatpush2.bf16.msra.mxu0 %v1029
  %1458 = vmatprep.subr.bf16.mxu0 %v1026
  %1459 = vmatpush2.bf16.msra.mxu0 %v1025
  %1460 = vmatprep.subr.bf16.mxu0 %v1022
  %1461 = vmatpush2.bf16.msra.mxu0 %v1021
  %1462 = vmatprep.subr.bf16.mxu0 %v1018
  %1463 = vmatpush2.bf16.msra.mxu0 %v1017
  %1464 = vmatprep.subr.bf16.mxu0 %v1014
  %1465 = vmatpush2.bf16.msra.mxu0 %v1013
  %1466 = vmatprep.subr.bf16.mxu0 %v1010
  %1467 = vmatpush2.bf16.msra.mxu0 %v1009
  %1468 = vmatprep.mubr.bf16.mxu0 %v264
  %1469 = vmatmul.mubr.bf16.gmra.mxu0 %v263
  %v1470 = vpop.f32.mrf.mxu0
  %v1471 = vadd.f32 %v1430, %v1470
  %v1472 = vpop.f32.mrf.mxu0
  %v1473 = vadd.f32 %v1432, %v1472
  %v1474 = vpop.f32.mrf.mxu0
  %v1475 = vpop.f32.mrf.mxu0
  %1476 = vdwg.mxu0
  %v1477 = vmax.f32 %v1348, 0.0
  %v1478 = vmax.f32 %v1350, 0.0
  %v1479 = vmax.f32 %v1471, 0.0
  %v1480 = vmax.f32 %v1473, 0.0
  %v1481 = vpack.c.bf16 %v1477, %v1477
  %v1482 = vpack.c.bf16 %v1478, %v1478
  %v1483 = vpack.c.bf16 %v1479, %v1479
  %v1484 = vpack.c.bf16 %v1480, %v1480
  %v1485 = vld [vmem:[%s3] sm:$0xff]
  %v1486 = vld [vmem:[%s3 + $0x8] sm:$0xff]
  %v1487 = vld [vmem:[%s3 + $0x10] sm:$0xff]
  %v1488 = vld [vmem:[%s3 + $0x18] sm:$0xff]
  %v1489 = vld [vmem:[%s3 + $0x20] sm:$0xff]
  %v1490 = vld [vmem:[%s3 + $0x28] sm:$0xff]
  %v1491 = vld [vmem:[%s3 + $0x30] sm:$0xff]
  %v1492 = vld [vmem:[%s3 + $0x38] sm:$0xff]
  %v1493 = vld [vmem:[%s3 + $0x40] sm:$0xff]
  %v1494 = vld [vmem:[%s3 + $0x48] sm:$0xff]
  %v1495 = vld [vmem:[%s3 + $0x50] sm:$0xff]
  %v1496 = vld [vmem:[%s3 + $0x58] sm:$0xff]
  %v1497 = vld [vmem:[%s3 + $0x60] sm:$0xff]
  %v1498 = vld [vmem:[%s3 + $0x68] sm:$0xff]
  %v1499 = vld [vmem:[%s3 + $0x70] sm:$0xff]
  %v1500 = vld [vmem:[%s3 + $0x78] sm:$0xff]
  %v1501 = vld [vmem:[%s3 + $0x80] sm:$0xff]
  %v1502 = vld [vmem:[%s3 + $0x88] sm:$0xff]
  %v1503 = vld [vmem:[%s3 + $0x90] sm:$0xff]
  %v1504 = vld [vmem:[%s3 + $0x98] sm:$0xff]
  %v1505 = vld [vmem:[%s3 + $0xa0] sm:$0xff]
  %v1506 = vld [vmem:[%s3 + $0xa8] sm:$0xff]
  %v1507 = vld [vmem:[%s3 + $0xb0] sm:$0xff]
  %v1508 = vld [vmem:[%s3 + $0xb8] sm:$0xff]
  %v1509 = vld [vmem:[%s3 + $0xc0] sm:$0xff]
  %v1510 = vld [vmem:[%s3 + $0xc8] sm:$0xff]
  %v1511 = vld [vmem:[%s3 + $0xd0] sm:$0xff]
  %v1512 = vld [vmem:[%s3 + $0xd8] sm:$0xff]
  %v1513 = vld [vmem:[%s3 + $0xe0] sm:$0xff]
  %v1514 = vld [vmem:[%s3 + $0xe8] sm:$0xff]
  %v1515 = vld [vmem:[%s3 + $0xf0] sm:$0xff]
  %v1516 = vld [vmem:[%s3 + $0xf8] sm:$0xff]
  %v1517 = vld [vmem:[%s3 + $0x100] sm:$0xff]
  %v1518 = vld [vmem:[%s3 + $0x108] sm:$0xff]
  %v1519 = vld [vmem:[%s3 + $0x110] sm:$0xff]
  %v1520 = vld [vmem:[%s3 + $0x118] sm:$0xff]
  %v1521 = vld [vmem:[%s3 + $0x120] sm:$0xff]
  %v1522 = vld [vmem:[%s3 + $0x128] sm:$0xff]
  %v1523 = vld [vmem:[%s3 + $0x130] sm:$0xff]
  %v1524 = vld [vmem:[%s3 + $0x138] sm:$0xff]
  %v1525 = vld [vmem:[%s3 + $0x140] sm:$0xff]
  %v1526 = vld [vmem:[%s3 + $0x148] sm:$0xff]
  %v1527 = vld [vmem:[%s3 + $0x150] sm:$0xff]
  %v1528 = vld [vmem:[%s3 + $0x158] sm:$0xff]
  %v1529 = vld [vmem:[%s3 + $0x160] sm:$0xff]
  %v1530 = vld [vmem:[%s3 + $0x168] sm:$0xff]
  %v1531 = vld [vmem:[%s3 + $0x170] sm:$0xff]
  %v1532 = vld [vmem:[%s3 + $0x178] sm:$0xff]
  %v1533 = vld [vmem:[%s3 + $0x180] sm:$0xff]
  %v1534 = vld [vmem:[%s3 + $0x188] sm:$0xff]
  %v1535 = vld [vmem:[%s3 + $0x190] sm:$0xff]
  %v1536 = vld [vmem:[%s3 + $0x198] sm:$0xff]
  %v1537 = vld [vmem:[%s3 + $0x1a0] sm:$0xff]
  %v1538 = vld [vmem:[%s3 + $0x1a8] sm:$0xff]
  %v1539 = vld [vmem:[%s3 + $0x1b0] sm:$0xff]
  %v1540 = vld [vmem:[%s3 + $0x1b8] sm:$0xff]
  %v1541 = vld [vmem:[%s3 + $0x1c0] sm:$0xff]
  %v1542 = vld [vmem:[%s3 + $0x1c8] sm:$0xff]
  %v1543 = vld [vmem:[%s3 + $0x1d0] sm:$0xff]
  %v1544 = vld [vmem:[%s3 + $0x1d8] sm:$0xff]
  %v1545 = vld [vmem:[%s3 + $0x1e0] sm:$0xff]
  %v1546 = vld [vmem:[%s3 + $0x1e8] sm:$0xff]
  %v1547 = vld [vmem:[%s3 + $0x1f0] sm:$0xff]
  %v1548 = vld [vmem:[%s3 + $0x1f8] sm:$0xff]
  %v1549 = vld [vmem:[%s3 + $0x200] sm:$0xff]
  %v1550 = vld [vmem:[%s3 + $0x208] sm:$0xff]
  %v1551 = vld [vmem:[%s3 + $0x210] sm:$0xff]
  %v1552 = vld [vmem:[%s3 + $0x218] sm:$0xff]
  %v1553 = vld [vmem:[%s3 + $0x220] sm:$0xff]
  %v1554 = vld [vmem:[%s3 + $0x228] sm:$0xff]
  %v1555 = vld [vmem:[%s3 + $0x230] sm:$0xff]
  %v1556 = vld [vmem:[%s3 + $0x238] sm:$0xff]
  %v1557 = vld [vmem:[%s3 + $0x240] sm:$0xff]
  %v1558 = vld [vmem:[%s3 + $0x248] sm:$0xff]
  %v1559 = vld [vmem:[%s3 + $0x250] sm:$0xff]
  %v1560 = vld [vmem:[%s3 + $0x258] sm:$0xff]
  %v1561 = vld [vmem:[%s3 + $0x260] sm:$0xff]
  %v1562 = vld [vmem:[%s3 + $0x268] sm:$0xff]
  %v1563 = vld [vmem:[%s3 + $0x270] sm:$0xff]
  %v1564 = vld [vmem:[%s3 + $0x278] sm:$0xff]
  %v1565 = vld [vmem:[%s3 + $0x280] sm:$0xff]
  %v1566 = vld [vmem:[%s3 + $0x288] sm:$0xff]
  %v1567 = vld [vmem:[%s3 + $0x290] sm:$0xff]
  %v1568 = vld [vmem:[%s3 + $0x298] sm:$0xff]
  %v1569 = vld [vmem:[%s3 + $0x2a0] sm:$0xff]
  %v1570 = vld [vmem:[%s3 + $0x2a8] sm:$0xff]
  %v1571 = vld [vmem:[%s3 + $0x2b0] sm:$0xff]
  %v1572 = vld [vmem:[%s3 + $0x2b8] sm:$0xff]
  %v1573 = vld [vmem:[%s3 + $0x2c0] sm:$0xff]
  %v1574 = vld [vmem:[%s3 + $0x2c8] sm:$0xff]
  %v1575 = vld [vmem:[%s3 + $0x2d0] sm:$0xff]
  %v1576 = vld [vmem:[%s3 + $0x2d8] sm:$0xff]
  %v1577 = vld [vmem:[%s3 + $0x2e0] sm:$0xff]
  %v1578 = vld [vmem:[%s3 + $0x2e8] sm:$0xff]
  %v1579 = vld [vmem:[%s3 + $0x2f0] sm:$0xff]
  %v1580 = vld [vmem:[%s3 + $0x2f8] sm:$0xff]
  %v1581 = vld [vmem:[%s3 + $0x300] sm:$0xff]
  %v1582 = vld [vmem:[%s3 + $0x308] sm:$0xff]
  %v1583 = vld [vmem:[%s4] sm:$0xf]
  %v1585 = vlaneseq
  %v1586 = vshrl.u32 %v1585, 7
  %v1587 = vsub.s32 0, %v1586
  %v1588 = vrot.slane %v1583, %v1587
  %v1589 = vlaneseq
  %v1590 = vshrl.u32 %v1589, 7
  %v1591 = vsub.s32 1, %v1590
  %v1592 = vrot.slane %v1583, %v1591
  %v1593 = vlaneseq
  %v1594 = vshrl.u32 %v1593, 7
  %v1595 = vsub.s32 2, %v1594
  %v1596 = vrot.slane %v1583, %v1595
  %v1597 = vlaneseq
  %v1598 = vshrl.u32 %v1597, 7
  %v1599 = vsub.s32 3, %v1598
  %v1600 = vrot.slane %v1583, %v1599
  %v1703 = vunpack.c.l.b16 %v1485
  %v1704 = vunpack.c.h.b16 %v1485
  %v1705 = vunpack.c.l.b16 %v1486
  %v1706 = vunpack.c.h.b16 %v1486
  %v1707 = vunpack.c.l.b16 %v1487
  %v1708 = vunpack.c.h.b16 %v1487
  %v1709 = vunpack.c.l.b16 %v1488
  %v1710 = vunpack.c.h.b16 %v1488
  %v1711 = vunpack.c.l.b16 %v1489
  %v1712 = vunpack.c.h.b16 %v1489
  %v1713 = vunpack.c.l.b16 %v1490
  %v1714 = vunpack.c.h.b16 %v1490
  %v1715 = vunpack.c.l.b16 %v1491
  %v1716 = vunpack.c.h.b16 %v1491
  %v1717 = vunpack.c.l.b16 %v1492
  %v1718 = vunpack.c.h.b16 %v1492
  %v1719 = vunpack.c.l.b16 %v1493
  %v1720 = vunpack.c.h.b16 %v1493
  %v1721 = vunpack.c.l.b16 %v1494
  %v1722 = vunpack.c.h.b16 %v1494
  %v1723 = vunpack.c.l.b16 %v1495
  %v1724 = vunpack.c.h.b16 %v1495
  %v1725 = vunpack.c.l.b16 %v1496
  %v1726 = vunpack.c.h.b16 %v1496
  %v1727 = vunpack.c.l.b16 %v1497
  %v1728 = vunpack.c.h.b16 %v1497
  %v1729 = vunpack.c.l.b16 %v1498
  %v1730 = vunpack.c.h.b16 %v1498
  %v1731 = vunpack.c.l.b16 %v1499
  %v1732 = vunpack.c.h.b16 %v1499
  %v1733 = vunpack.c.l.b16 %v1500
  %v1734 = vunpack.c.h.b16 %v1500
  %v1735 = vunpack.c.l.b16 %v1501
  %v1736 = vunpack.c.h.b16 %v1501
  %v1737 = vunpack.c.l.b16 %v1502
  %v1738 = vunpack.c.h.b16 %v1502
  %v1739 = vunpack.c.l.b16 %v1503
  %v1740 = vunpack.c.h.b16 %v1503
  %v1741 = vunpack.c.l.b16 %v1504
  %v1742 = vunpack.c.h.b16 %v1504
  %v1743 = vunpack.c.l.b16 %v1505
  %v1744 = vunpack.c.h.b16 %v1505
  %v1745 = vunpack.c.l.b16 %v1506
  %v1746 = vunpack.c.h.b16 %v1506
  %v1747 = vunpack.c.l.b16 %v1507
  %v1748 = vunpack.c.h.b16 %v1507
  %v1749 = vunpack.c.l.b16 %v1508
  %v1750 = vunpack.c.h.b16 %v1508
  %v1751 = vunpack.c.l.b16 %v1509
  %v1752 = vunpack.c.h.b16 %v1509
  %v1753 = vunpack.c.l.b16 %v1510
  %v1754 = vunpack.c.h.b16 %v1510
  %v1755 = vunpack.c.l.b16 %v1511
  %v1756 = vunpack.c.h.b16 %v1511
  %v1757 = vunpack.c.l.b16 %v1512
  %v1758 = vunpack.c.h.b16 %v1512
  %v1759 = vunpack.c.l.b16 %v1513
  %v1760 = vunpack.c.h.b16 %v1513
  %v1761 = vunpack.c.l.b16 %v1514
  %v1762 = vunpack.c.h.b16 %v1514
  %v1763 = vunpack.c.l.b16 %v1515
  %v1764 = vunpack.c.h.b16 %v1515
  %v1765 = vunpack.c.l.b16 %v1516
  %v1766 = vunpack.c.h.b16 %v1516
  %v1767 = vunpack.c.l.b16 %v1517
  %v1768 = vunpack.c.h.b16 %v1517
  %v1769 = vunpack.c.l.b16 %v1518
  %v1770 = vunpack.c.h.b16 %v1518
  %v1771 = vunpack.c.l.b16 %v1519
  %v1772 = vunpack.c.h.b16 %v1519
  %v1773 = vunpack.c.l.b16 %v1520
  %v1774 = vunpack.c.h.b16 %v1520
  %v1775 = vunpack.c.l.b16 %v1521
  %v1776 = vunpack.c.h.b16 %v1521
  %v1777 = vunpack.c.l.b16 %v1522
  %v1778 = vunpack.c.h.b16 %v1522
  %v1779 = vunpack.c.l.b16 %v1523
  %v1780 = vunpack.c.h.b16 %v1523
  %v1781 = vunpack.c.l.b16 %v1524
  %v1782 = vunpack.c.h.b16 %v1524
  %v1783 = vunpack.c.l.b16 %v1525
  %v1784 = vunpack.c.h.b16 %v1525
  %v1785 = vunpack.c.l.b16 %v1526
  %v1786 = vunpack.c.h.b16 %v1526
  %v1787 = vunpack.c.l.b16 %v1527
  %v1788 = vunpack.c.h.b16 %v1527
  %v1789 = vunpack.c.l.b16 %v1528
  %v1790 = vunpack.c.h.b16 %v1528
  %v1791 = vunpack.c.l.b16 %v1529
  %v1792 = vunpack.c.h.b16 %v1529
  %v1793 = vunpack.c.l.b16 %v1530
  %v1794 = vunpack.c.h.b16 %v1530
  %v1795 = vunpack.c.l.b16 %v1531
  %v1796 = vunpack.c.h.b16 %v1531
  %v1797 = vunpack.c.l.b16 %v1532
  %v1798 = vunpack.c.h.b16 %v1532
  %v1799 = vunpack.c.l.b16 %v1533
  %v1800 = vunpack.c.h.b16 %v1533
  %v1801 = vunpack.c.l.b16 %v1534
  %v1802 = vunpack.c.h.b16 %v1534
  %v1803 = vunpack.c.l.b16 %v1535
  %v1804 = vunpack.c.h.b16 %v1535
  %v1805 = vunpack.c.l.b16 %v1536
  %v1806 = vunpack.c.h.b16 %v1536
  %v1807 = vunpack.c.l.b16 %v1537
  %v1808 = vunpack.c.h.b16 %v1537
  %v1809 = vunpack.c.l.b16 %v1538
  %v1810 = vunpack.c.h.b16 %v1538
  %v1811 = vunpack.c.l.b16 %v1539
  %v1812 = vunpack.c.h.b16 %v1539
  %v1813 = vunpack.c.l.b16 %v1540
  %v1814 = vunpack.c.h.b16 %v1540
  %v1815 = vunpack.c.l.b16 %v1541
  %v1816 = vunpack.c.h.b16 %v1541
  %v1817 = vunpack.c.l.b16 %v1542
  %v1818 = vunpack.c.h.b16 %v1542
  %v1819 = vunpack.c.l.b16 %v1543
  %v1820 = vunpack.c.h.b16 %v1543
  %v1821 = vunpack.c.l.b16 %v1544
  %v1822 = vunpack.c.h.b16 %v1544
  %v1823 = vunpack.c.l.b16 %v1545
  %v1824 = vunpack.c.h.b16 %v1545
  %v1825 = vunpack.c.l.b16 %v1546
  %v1826 = vunpack.c.h.b16 %v1546
  %v1827 = vunpack.c.l.b16 %v1547
  %v1828 = vunpack.c.h.b16 %v1547
  %v1829 = vunpack.c.l.b16 %v1548
  %v1830 = vunpack.c.h.b16 %v1548
  %v1831 = vunpack.c.l.b16 %v1549
  %v1832 = vunpack.c.h.b16 %v1549
  %v1833 = vunpack.c.l.b16 %v1550
  %v1834 = vunpack.c.h.b16 %v1550
  %v1835 = vunpack.c.l.b16 %v1551
  %v1836 = vunpack.c.h.b16 %v1551
  %v1837 = vunpack.c.l.b16 %v1552
  %v1838 = vunpack.c.h.b16 %v1552
  %v1839 = vunpack.c.l.b16 %v1553
  %v1840 = vunpack.c.h.b16 %v1553
  %v1841 = vunpack.c.l.b16 %v1554
  %v1842 = vunpack.c.h.b16 %v1554
  %v1843 = vunpack.c.l.b16 %v1555
  %v1844 = vunpack.c.h.b16 %v1555
  %v1845 = vunpack.c.l.b16 %v1556
  %v1846 = vunpack.c.h.b16 %v1556
  %v1847 = vunpack.c.l.b16 %v1557
  %v1848 = vunpack.c.h.b16 %v1557
  %v1849 = vunpack.c.l.b16 %v1558
  %v1850 = vunpack.c.h.b16 %v1558
  %v1851 = vunpack.c.l.b16 %v1559
  %v1852 = vunpack.c.h.b16 %v1559
  %v1853 = vunpack.c.l.b16 %v1560
  %v1854 = vunpack.c.h.b16 %v1560
  %v1855 = vunpack.c.l.b16 %v1561
  %v1856 = vunpack.c.h.b16 %v1561
  %v1857 = vunpack.c.l.b16 %v1562
  %v1858 = vunpack.c.h.b16 %v1562
  %v1859 = vunpack.c.l.b16 %v1563
  %v1860 = vunpack.c.h.b16 %v1563
  %v1861 = vunpack.c.l.b16 %v1564
  %v1862 = vunpack.c.h.b16 %v1564
  %v1863 = vunpack.c.l.b16 %v1565
  %v1864 = vunpack.c.h.b16 %v1565
  %v1865 = vunpack.c.l.b16 %v1566
  %v1866 = vunpack.c.h.b16 %v1566
  %v1867 = vunpack.c.l.b16 %v1567
  %v1868 = vunpack.c.h.b16 %v1567
  %v1869 = vunpack.c.l.b16 %v1568
  %v1870 = vunpack.c.h.b16 %v1568
  %v1871 = vunpack.c.l.b16 %v1569
  %v1872 = vunpack.c.h.b16 %v1569
  %v1873 = vunpack.c.l.b16 %v1570
  %v1874 = vunpack.c.h.b16 %v1570
  %v1875 = vunpack.c.l.b16 %v1571
  %v1876 = vunpack.c.h.b16 %v1571
  %v1877 = vunpack.c.l.b16 %v1572
  %v1878 = vunpack.c.h.b16 %v1572
  %v1879 = vunpack.c.l.b16 %v1573
  %v1880 = vunpack.c.h.b16 %v1573
  %v1881 = vunpack.c.l.b16 %v1574
  %v1882 = vunpack.c.h.b16 %v1574
  %v1883 = vunpack.c.l.b16 %v1575
  %v1884 = vunpack.c.h.b16 %v1575
  %v1885 = vunpack.c.l.b16 %v1576
  %v1886 = vunpack.c.h.b16 %v1576
  %v1887 = vunpack.c.l.b16 %v1577
  %v1888 = vunpack.c.h.b16 %v1577
  %v1889 = vunpack.c.l.b16 %v1578
  %v1890 = vunpack.c.h.b16 %v1578
  %v1891 = vunpack.c.l.b16 %v1579
  %v1892 = vunpack.c.h.b16 %v1579
  %v1893 = vunpack.c.l.b16 %v1580
  %v1894 = vunpack.c.h.b16 %v1580
  %v1895 = vunpack.c.l.b16 %v1581
  %v1896 = vunpack.c.h.b16 %v1581
  %v1897 = vunpack.c.l.b16 %v1582
  %v1898 = vunpack.c.h.b16 %v1582
  %v1899 = vpack.c.b16 %v1707, %v1703
  %v1900 = vpack.c.b16 %v1708, %v1704
  %v1901 = vpack.c.b16 %v1709, %v1705
  %v1902 = vpack.c.b16 %v1710, %v1706
  %v1903 = vpack.c.b16 %v1715, %v1711
  %v1904 = vpack.c.b16 %v1716, %v1712
  %v1905 = vpack.c.b16 %v1717, %v1713
  %v1906 = vpack.c.b16 %v1718, %v1714
  %v1907 = vpack.c.b16 %v1723, %v1719
  %v1908 = vpack.c.b16 %v1724, %v1720
  %v1909 = vpack.c.b16 %v1725, %v1721
  %v1910 = vpack.c.b16 %v1726, %v1722
  %v1911 = vpack.c.b16 %v1731, %v1727
  %v1912 = vpack.c.b16 %v1732, %v1728
  %v1913 = vpack.c.b16 %v1733, %v1729
  %v1914 = vpack.c.b16 %v1734, %v1730
  %v1915 = vpack.c.b16 %v1739, %v1735
  %v1916 = vpack.c.b16 %v1740, %v1736
  %v1917 = vpack.c.b16 %v1741, %v1737
  %v1918 = vpack.c.b16 %v1742, %v1738
  %v1919 = vpack.c.b16 %v1747, %v1743
  %v1920 = vpack.c.b16 %v1748, %v1744
  %v1921 = vpack.c.b16 %v1749, %v1745
  %v1922 = vpack.c.b16 %v1750, %v1746
  %v1923 = vpack.c.b16 %v1755, %v1751
  %v1924 = vpack.c.b16 %v1756, %v1752
  %v1925 = vpack.c.b16 %v1757, %v1753
  %v1926 = vpack.c.b16 %v1758, %v1754
  %v1927 = vpack.c.b16 %v1763, %v1759
  %v1928 = vpack.c.b16 %v1764, %v1760
  %v1929 = vpack.c.b16 %v1765, %v1761
  %v1930 = vpack.c.b16 %v1766, %v1762
  %v1931 = vpack.c.b16 %v1771, %v1767
  %v1932 = vpack.c.b16 %v1772, %v1768
  %v1933 = vpack.c.b16 %v1773, %v1769
  %v1934 = vpack.c.b16 %v1774, %v1770
  %v1935 = vpack.c.b16 %v1779, %v1775
  %v1936 = vpack.c.b16 %v1780, %v1776
  %v1937 = vpack.c.b16 %v1781, %v1777
  %v1938 = vpack.c.b16 %v1782, %v1778
  %v1939 = vpack.c.b16 %v1787, %v1783
  %v1940 = vpack.c.b16 %v1788, %v1784
  %v1941 = vpack.c.b16 %v1789, %v1785
  %v1942 = vpack.c.b16 %v1790, %v1786
  %v1943 = vpack.c.b16 %v1795, %v1791
  %v1944 = vpack.c.b16 %v1796, %v1792
  %v1945 = vpack.c.b16 %v1797, %v1793
  %v1946 = vpack.c.b16 %v1798, %v1794
  %v1947 = vpack.c.b16 %v1803, %v1799
  %v1948 = vpack.c.b16 %v1804, %v1800
  %v1949 = vpack.c.b16 %v1805, %v1801
  %v1950 = vpack.c.b16 %v1806, %v1802
  %v1951 = vpack.c.b16 %v1811, %v1807
  %v1952 = vpack.c.b16 %v1812, %v1808
  %v1953 = vpack.c.b16 %v1813, %v1809
  %v1954 = vpack.c.b16 %v1814, %v1810
  %v1955 = vpack.c.b16 %v1819, %v1815
  %v1956 = vpack.c.b16 %v1820, %v1816
  %v1957 = vpack.c.b16 %v1821, %v1817
  %v1958 = vpack.c.b16 %v1822, %v1818
  %v1959 = vpack.c.b16 %v1827, %v1823
  %v1960 = vpack.c.b16 %v1828, %v1824
  %v1961 = vpack.c.b16 %v1829, %v1825
  %v1962 = vpack.c.b16 %v1830, %v1826
  %v1963 = vpack.c.b16 %v1835, %v1831
  %v1964 = vpack.c.b16 %v1836, %v1832
  %v1965 = vpack.c.b16 %v1837, %v1833
  %v1966 = vpack.c.b16 %v1838, %v1834
  %v1967 = vpack.c.b16 %v1843, %v1839
  %v1968 = vpack.c.b16 %v1844, %v1840
  %v1969 = vpack.c.b16 %v1845, %v1841
  %v1970 = vpack.c.b16 %v1846, %v1842
  %v1971 = vpack.c.b16 %v1851, %v1847
  %v1972 = vpack.c.b16 %v1852, %v1848
  %v1973 = vpack.c.b16 %v1853, %v1849
  %v1974 = vpack.c.b16 %v1854, %v1850
  %v1975 = vpack.c.b16 %v1859, %v1855
  %v1976 = vpack.c.b16 %v1860, %v1856
  %v1977 = vpack.c.b16 %v1861, %v1857
  %v1978 = vpack.c.b16 %v1862, %v1858
  %v1979 = vpack.c.b16 %v1867, %v1863
  %v1980 = vpack.c.b16 %v1868, %v1864
  %v1981 = vpack.c.b16 %v1869, %v1865
  %v1982 = vpack.c.b16 %v1870, %v1866
  %v1983 = vpack.c.b16 %v1875, %v1871
  %v1984 = vpack.c.b16 %v1876, %v1872
  %v1985 = vpack.c.b16 %v1877, %v1873
  %v1986 = vpack.c.b16 %v1878, %v1874
  %v1987 = vpack.c.b16 %v1883, %v1879
  %v1988 = vpack.c.b16 %v1884, %v1880
  %v1989 = vpack.c.b16 %v1885, %v1881
  %v1990 = vpack.c.b16 %v1886, %v1882
  %v1991 = vpack.c.b16 %v1891, %v1887
  %v1992 = vpack.c.b16 %v1892, %v1888
  %v1993 = vpack.c.b16 %v1893, %v1889
  %v1994 = vpack.c.b16 %v1894, %v1890
  %v1995 = vpack.c.b16 %v1895, %v1895
  %v1996 = vpack.c.b16 %v1896, %v1896
  %v1997 = vpack.c.b16 %v1897, %v1897
  %v1998 = vpack.c.b16 %v1898, %v1898
  %vm2095 = vcmask 64512
  %v2097 = vsel %vm2095, %v1484, 0
  %vm2099 = vcmask 1043456
  %v2101 = vsel %vm2099, %v1995, 0
  %v2104 = vsel %vm2099, %v1996, 0
  %v2107 = vsel %vm2099, %v1997, 0
  %v2110 = vsel %vm2099, %v1998, 0
  %2112 = vmatprep.subr.bf16.mxu0 %v1928
  %2113 = vmatpush1.bf16.msra.mxu0 %v1927
  %2114 = vmatprep.subr.bf16.mxu0 %v1924
  %2115 = vmatpush1.bf16.msra.mxu0 %v1923
  %2116 = vmatprep.subr.bf16.mxu0 %v1920
  %2117 = vmatpush1.bf16.msra.mxu0 %v1919
  %2118 = vmatprep.subr.bf16.mxu0 %v1916
  %2119 = vmatpush1.bf16.msra.mxu0 %v1915
  %2120 = vmatprep.subr.bf16.mxu0 %v1912
  %2121 = vmatpush1.bf16.msra.mxu0 %v1911
  %2122 = vmatprep.subr.bf16.mxu0 %v1908
  %2123 = vmatpush1.bf16.msra.mxu0 %v1907
  %2124 = vmatprep.subr.bf16.mxu0 %v1904
  %2125 = vmatpush1.bf16.msra.mxu0 %v1903
  %2126 = vmatprep.subr.bf16.mxu0 %v1900
  %2127 = vmatpush1.bf16.msra.mxu0 %v1899
  %2128 = vmatprep.subr.bf16.mxu0 %v1960
  %2129 = vmatpush2.bf16.msra.mxu0 %v1959
  %2130 = vmatprep.subr.bf16.mxu0 %v1956
  %2131 = vmatpush2.bf16.msra.mxu0 %v1955
  %2132 = vmatprep.subr.bf16.mxu0 %v1952
  %2133 = vmatpush2.bf16.msra.mxu0 %v1951
  %2134 = vmatprep.subr.bf16.mxu0 %v1948
  %2135 = vmatpush2.bf16.msra.mxu0 %v1947
  %2136 = vmatprep.subr.bf16.mxu0 %v1944
  %2137 = vmatpush2.bf16.msra.mxu0 %v1943
  %2138 = vmatprep.subr.bf16.mxu0 %v1940
  %2139 = vmatpush2.bf16.msra.mxu0 %v1939
  %2140 = vmatprep.subr.bf16.mxu0 %v1936
  %2141 = vmatpush2.bf16.msra.mxu0 %v1935
  %2142 = vmatprep.subr.bf16.mxu0 %v1932
  %2143 = vmatpush2.bf16.msra.mxu0 %v1931
  %2144 = vmatprep.mubr.bf16.mxu0 %v1482
  %2145 = vmatmul.mubr.bf16.gmra.mxu0 %v1481
  %v2146 = vpop.f32.mrf.mxu0
  %v2147 = vadd.f32 %v1588, %v2146
  %v2148 = vpop.f32.mrf.mxu0
  %v2149 = vadd.f32 %v1592, %v2148
  %v2150 = vpop.f32.mrf.mxu0
  %v2151 = vpop.f32.mrf.mxu0
  %2152 = vdwg.mxu0
  %2153 = vmatprep.subr.bf16.mxu0 %v1992
  %2154 = vmatpush1.bf16.msra.mxu0 %v1991
  %2155 = vmatprep.subr.bf16.mxu0 %v1988
  %2156 = vmatpush1.bf16.msra.mxu0 %v1987
  %2157 = vmatprep.subr.bf16.mxu0 %v1984
  %2158 = vmatpush1.bf16.msra.mxu0 %v1983
  %2159 = vmatprep.subr.bf16.mxu0 %v1980
  %2160 = vmatpush1.bf16.msra.mxu0 %v1979
  %2161 = vmatprep.subr.bf16.mxu0 %v1976
  %2162 = vmatpush1.bf16.msra.mxu0 %v1975
  %2163 = vmatprep.subr.bf16.mxu0 %v1972
  %2164 = vmatpush1.bf16.msra.mxu0 %v1971
  %2165 = vmatprep.subr.bf16.mxu0 %v1968
  %2166 = vmatpush1.bf16.msra.mxu0 %v1967
  %2167 = vmatprep.subr.bf16.mxu0 %v1964
  %2168 = vmatpush1.bf16.msra.mxu0 %v1963
  %2169 = vmatprep.subr.bf16.mxu0 0
  %2170 = vmatpush2.bf16.msra.mxu0 0
  %2171 = vmatprep.subr.bf16.mxu0 0
  %2172 = vmatpush2.bf16.msra.mxu0 0
  %2173 = vmatprep.subr.bf16.mxu0 0
  %2174 = vmatpush2.bf16.msra.mxu0 0
  %2175 = vmatprep.subr.bf16.mxu0 0
  %2176 = vmatpush2.bf16.msra.mxu0 0
  %2177 = vmatprep.subr.bf16.mxu0 0
  %2178 = vmatpush2.bf16.msra.mxu0 0
  %2179 = vmatprep.subr.bf16.mxu0 0
  %2180 = vmatpush2.bf16.msra.mxu0 0
  %2181 = vmatprep.subr.bf16.mxu0 0
  %2182 = vmatpush2.bf16.msra.mxu0 0
  %2183 = vmatprep.subr.bf16.mxu0 %v2104
  %2184 = vmatpush2.bf16.msra.mxu0 %v2101
  %2185 = vmatprep.mubr.bf16.mxu0 %v2097
  %2186 = vmatmul.mubr.bf16.gmra.mxu0 %v1483
  %v2187 = vpop.f32.mrf.mxu0
  %v2188 = vadd.f32 %v2147, %v2187
  %v2189 = vpop.f32.mrf.mxu0
  %v2190 = vadd.f32 %v2149, %v2189
  %v2191 = vpop.f32.mrf.mxu0
  %v2192 = vpop.f32.mrf.mxu0
  %2193 = vdwg.mxu0
  %2194 = vmatprep.subr.bf16.mxu0 %v1930
  %2195 = vmatpush1.bf16.msra.mxu0 %v1929
  %2196 = vmatprep.subr.bf16.mxu0 %v1926
  %2197 = vmatpush1.bf16.msra.mxu0 %v1925
  %2198 = vmatprep.subr.bf16.mxu0 %v1922
  %2199 = vmatpush1.bf16.msra.mxu0 %v1921
  %2200 = vmatprep.subr.bf16.mxu0 %v1918
  %2201 = vmatpush1.bf16.msra.mxu0 %v1917
  %2202 = vmatprep.subr.bf16.mxu0 %v1914
  %2203 = vmatpush1.bf16.msra.mxu0 %v1913
  %2204 = vmatprep.subr.bf16.mxu0 %v1910
  %2205 = vmatpush1.bf16.msra.mxu0 %v1909
  %2206 = vmatprep.subr.bf16.mxu0 %v1906
  %2207 = vmatpush1.bf16.msra.mxu0 %v1905
  %2208 = vmatprep.subr.bf16.mxu0 %v1902
  %2209 = vmatpush1.bf16.msra.mxu0 %v1901
  %2210 = vmatprep.subr.bf16.mxu0 %v1962
  %2211 = vmatpush2.bf16.msra.mxu0 %v1961
  %2212 = vmatprep.subr.bf16.mxu0 %v1958
  %2213 = vmatpush2.bf16.msra.mxu0 %v1957
  %2214 = vmatprep.subr.bf16.mxu0 %v1954
  %2215 = vmatpush2.bf16.msra.mxu0 %v1953
  %2216 = vmatprep.subr.bf16.mxu0 %v1950
  %2217 = vmatpush2.bf16.msra.mxu0 %v1949
  %2218 = vmatprep.subr.bf16.mxu0 %v1946
  %2219 = vmatpush2.bf16.msra.mxu0 %v1945
  %2220 = vmatprep.subr.bf16.mxu0 %v1942
  %2221 = vmatpush2.bf16.msra.mxu0 %v1941
  %2222 = vmatprep.subr.bf16.mxu0 %v1938
  %2223 = vmatpush2.bf16.msra.mxu0 %v1937
  %2224 = vmatprep.subr.bf16.mxu0 %v1934
  %2225 = vmatpush2.bf16.msra.mxu0 %v1933
  %2226 = vmatprep.mubr.bf16.mxu0 %v1482
  %2227 = vmatmul.mubr.bf16.gmra.mxu0 %v1481
  %v2228 = vpop.f32.mrf.mxu0
  %v2229 = vadd.f32 %v1596, %v2228
  %v2230 = vpop.f32.mrf.mxu0
  %v2231 = vadd.f32 %v1600, %v2230
  %v2232 = vpop.f32.mrf.mxu0
  %v2233 = vpop.f32.mrf.mxu0
  %2234 = vdwg.mxu0
  %2235 = vmatprep.subr.bf16.mxu0 %v1994
  %2236 = vmatpush1.bf16.msra.mxu0 %v1993
  %2237 = vmatprep.subr.bf16.mxu0 %v1990
  %2238 = vmatpush1.bf16.msra.mxu0 %v1989
  %2239 = vmatprep.subr.bf16.mxu0 %v1986
  %2240 = vmatpush1.bf16.msra.mxu0 %v1985
  %2241 = vmatprep.subr.bf16.mxu0 %v1982
  %2242 = vmatpush1.bf16.msra.mxu0 %v1981
  %2243 = vmatprep.subr.bf16.mxu0 %v1978
  %2244 = vmatpush1.bf16.msra.mxu0 %v1977
  %2245 = vmatprep.subr.bf16.mxu0 %v1974
  %2246 = vmatpush1.bf16.msra.mxu0 %v1973
  %2247 = vmatprep.subr.bf16.mxu0 %v1970
  %2248 = vmatpush1.bf16.msra.mxu0 %v1969
  %2249 = vmatprep.subr.bf16.mxu0 %v1966
  %2250 = vmatpush1.bf16.msra.mxu0 %v1965
  %2251 = vmatprep.subr.bf16.mxu0 0
  %2252 = vmatpush2.bf16.msra.mxu0 0
  %2253 = vmatprep.subr.bf16.mxu0 0
  %2254 = vmatpush2.bf16.msra.mxu0 0
  %2255 = vmatprep.subr.bf16.mxu0 0
  %2256 = vmatpush2.bf16.msra.mxu0 0
  %2257 = vmatprep.subr.bf16.mxu0 0
  %2258 = vmatpush2.bf16.msra.mxu0 0
  %2259 = vmatprep.subr.bf16.mxu0 0
  %2260 = vmatpush2.bf16.msra.mxu0 0
  %2261 = vmatprep.subr.bf16.mxu0 0
  %2262 = vmatpush2.bf16.msra.mxu0 0
  %2263 = vmatprep.subr.bf16.mxu0 0
  %2264 = vmatpush2.bf16.msra.mxu0 0
  %2265 = vmatprep.subr.bf16.mxu0 %v2110
  %2266 = vmatpush2.bf16.msra.mxu0 %v2107
  %2267 = vmatprep.mubr.bf16.mxu0 %v2097
  %2268 = vmatmul.mubr.bf16.gmra.mxu0 %v1483
  %v2269 = vpop.f32.mrf.mxu0
  %v2270 = vadd.f32 %v2229, %v2269
  %v2271 = vpop.f32.mrf.mxu0
  %v2272 = vadd.f32 %v2231, %v2271
  %v2273 = vpop.f32.mrf.mxu0
  %v2274 = vpop.f32.mrf.mxu0
  %2275 = vdwg.mxu0
  %v2276 = vmax.f32 %v2188, 0.0
  %v2277 = vmax.f32 %v2190, 0.0
  %v2278 = vmax.f32 %v2270, 0.0
  %v2279 = vmax.f32 %v2272, 0.0
  %v2280 = vpack.c.bf16 %v2276, %v2276
  %v2281 = vpack.c.bf16 %v2277, %v2277
  %v2282 = vpack.c.bf16 %v2278, %v2278
  %v2283 = vpack.c.bf16 %v2279, %v2279
  %v2284 = vld [vmem:[%s5] sm:$0xff]
  %v2285 = vld [vmem:[%s5 + $0x8] sm:$0xff]
  %v2286 = vld [vmem:[%s5 + $0x10] sm:$0xff]
  %v2287 = vld [vmem:[%s5 + $0x18] sm:$0xff]
  %v2288 = vld [vmem:[%s5 + $0x20] sm:$0xff]
  %v2289 = vld [vmem:[%s5 + $0x28] sm:$0xff]
  %v2290 = vld [vmem:[%s5 + $0x30] sm:$0xff]
  %v2291 = vld [vmem:[%s5 + $0x38] sm:$0xff]
  %v2292 = vld [vmem:[%s5 + $0x40] sm:$0xff]
  %v2293 = vld [vmem:[%s5 + $0x48] sm:$0xff]
  %v2294 = vld [vmem:[%s5 + $0x50] sm:$0xff]
  %v2295 = vld [vmem:[%s5 + $0x58] sm:$0xff]
  %v2296 = vld [vmem:[%s5 + $0x60] sm:$0xff]
  %v2297 = vld [vmem:[%s5 + $0x68] sm:$0xff]
  %v2298 = vld [vmem:[%s5 + $0x70] sm:$0xff]
  %v2299 = vld [vmem:[%s5 + $0x78] sm:$0xff]
  %v2300 = vld [vmem:[%s5 + $0x80] sm:$0xff]
  %v2301 = vld [vmem:[%s5 + $0x88] sm:$0xff]
  %v2302 = vld [vmem:[%s5 + $0x90] sm:$0xff]
  %v2303 = vld [vmem:[%s5 + $0x98] sm:$0xff]
  %v2304 = vld [vmem:[%s5 + $0xa0] sm:$0xff]
  %v2305 = vld [vmem:[%s5 + $0xa8] sm:$0xff]
  %v2306 = vld [vmem:[%s5 + $0xb0] sm:$0xff]
  %v2307 = vld [vmem:[%s5 + $0xb8] sm:$0xff]
  %v2308 = vld [vmem:[%s5 + $0xc0] sm:$0xff]
  %v2309 = vld [vmem:[%s5 + $0xc8] sm:$0xff]
  %v2310 = vld [vmem:[%s5 + $0xd0] sm:$0xff]
  %v2311 = vld [vmem:[%s5 + $0xd8] sm:$0xff]
  %v2312 = vld [vmem:[%s5 + $0xe0] sm:$0xff]
  %v2313 = vld [vmem:[%s5 + $0xe8] sm:$0xff]
  %v2314 = vld [vmem:[%s5 + $0xf0] sm:$0xff]
  %v2315 = vld [vmem:[%s5 + $0xf8] sm:$0xff]
  %v2316 = vld [vmem:[%s5 + $0x100] sm:$0xff]
  %v2317 = vld [vmem:[%s5 + $0x108] sm:$0xff]
  %v2318 = vld [vmem:[%s5 + $0x110] sm:$0xff]
  %v2319 = vld [vmem:[%s5 + $0x118] sm:$0xff]
  %v2320 = vld [vmem:[%s5 + $0x120] sm:$0xff]
  %v2321 = vld [vmem:[%s5 + $0x128] sm:$0xff]
  %v2322 = vld [vmem:[%s5 + $0x130] sm:$0xff]
  %v2323 = vld [vmem:[%s5 + $0x138] sm:$0xff]
  %v2324 = vld [vmem:[%s5 + $0x140] sm:$0xff]
  %v2325 = vld [vmem:[%s5 + $0x148] sm:$0xff]
  %v2326 = vld [vmem:[%s5 + $0x150] sm:$0xff]
  %v2327 = vld [vmem:[%s5 + $0x158] sm:$0xff]
  %v2328 = vld [vmem:[%s5 + $0x160] sm:$0xff]
  %v2329 = vld [vmem:[%s5 + $0x168] sm:$0xff]
  %v2330 = vld [vmem:[%s5 + $0x170] sm:$0xff]
  %v2331 = vld [vmem:[%s5 + $0x178] sm:$0xff]
  %v2332 = vld [vmem:[%s5 + $0x180] sm:$0xff]
  %v2333 = vld [vmem:[%s5 + $0x188] sm:$0xff]
  %v2334 = vld [vmem:[%s6] sm:$0x3]
  %v2336 = vlaneseq
  %v2337 = vshrl.u32 %v2336, 7
  %v2338 = vsub.s32 0, %v2337
  %v2339 = vrot.slane %v2334, %v2338
  %v2340 = vlaneseq
  %v2341 = vshrl.u32 %v2340, 7
  %v2342 = vsub.s32 1, %v2341
  %v2343 = vrot.slane %v2334, %v2342
  %v2396 = vunpack.c.l.b16 %v2284
  %v2397 = vunpack.c.h.b16 %v2284
  %v2398 = vunpack.c.l.b16 %v2285
  %v2399 = vunpack.c.h.b16 %v2285
  %v2400 = vunpack.c.l.b16 %v2286
  %v2401 = vunpack.c.h.b16 %v2286
  %v2402 = vunpack.c.l.b16 %v2287
  %v2403 = vunpack.c.h.b16 %v2287
  %v2404 = vunpack.c.l.b16 %v2288
  %v2405 = vunpack.c.h.b16 %v2288
  %v2406 = vunpack.c.l.b16 %v2289
  %v2407 = vunpack.c.h.b16 %v2289
  %v2408 = vunpack.c.l.b16 %v2290
  %v2409 = vunpack.c.h.b16 %v2290
  %v2410 = vunpack.c.l.b16 %v2291
  %v2411 = vunpack.c.h.b16 %v2291
  %v2412 = vunpack.c.l.b16 %v2292
  %v2413 = vunpack.c.h.b16 %v2292
  %v2414 = vunpack.c.l.b16 %v2293
  %v2415 = vunpack.c.h.b16 %v2293
  %v2416 = vunpack.c.l.b16 %v2294
  %v2417 = vunpack.c.h.b16 %v2294
  %v2418 = vunpack.c.l.b16 %v2295
  %v2419 = vunpack.c.h.b16 %v2295
  %v2420 = vunpack.c.l.b16 %v2296
  %v2421 = vunpack.c.h.b16 %v2296
  %v2422 = vunpack.c.l.b16 %v2297
  %v2423 = vunpack.c.h.b16 %v2297
  %v2424 = vunpack.c.l.b16 %v2298
  %v2425 = vunpack.c.h.b16 %v2298
  %v2426 = vunpack.c.l.b16 %v2299
  %v2427 = vunpack.c.h.b16 %v2299
  %v2428 = vunpack.c.l.b16 %v2300
  %v2429 = vunpack.c.h.b16 %v2300
  %v2430 = vunpack.c.l.b16 %v2301
  %v2431 = vunpack.c.h.b16 %v2301
  %v2432 = vunpack.c.l.b16 %v2302
  %v2433 = vunpack.c.h.b16 %v2302
  %v2434 = vunpack.c.l.b16 %v2303
  %v2435 = vunpack.c.h.b16 %v2303
  %v2436 = vunpack.c.l.b16 %v2304
  %v2437 = vunpack.c.h.b16 %v2304
  %v2438 = vunpack.c.l.b16 %v2305
  %v2439 = vunpack.c.h.b16 %v2305
  %v2440 = vunpack.c.l.b16 %v2306
  %v2441 = vunpack.c.h.b16 %v2306
  %v2442 = vunpack.c.l.b16 %v2307
  %v2443 = vunpack.c.h.b16 %v2307
  %v2444 = vunpack.c.l.b16 %v2308
  %v2445 = vunpack.c.h.b16 %v2308
  %v2446 = vunpack.c.l.b16 %v2309
  %v2447 = vunpack.c.h.b16 %v2309
  %v2448 = vunpack.c.l.b16 %v2310
  %v2449 = vunpack.c.h.b16 %v2310
  %v2450 = vunpack.c.l.b16 %v2311
  %v2451 = vunpack.c.h.b16 %v2311
  %v2452 = vunpack.c.l.b16 %v2312
  %v2453 = vunpack.c.h.b16 %v2312
  %v2454 = vunpack.c.l.b16 %v2313
  %v2455 = vunpack.c.h.b16 %v2313
  %v2456 = vunpack.c.l.b16 %v2314
  %v2457 = vunpack.c.h.b16 %v2314
  %v2458 = vunpack.c.l.b16 %v2315
  %v2459 = vunpack.c.h.b16 %v2315
  %v2460 = vunpack.c.l.b16 %v2316
  %v2461 = vunpack.c.h.b16 %v2316
  %v2462 = vunpack.c.l.b16 %v2317
  %v2463 = vunpack.c.h.b16 %v2317
  %v2464 = vunpack.c.l.b16 %v2318
  %v2465 = vunpack.c.h.b16 %v2318
  %v2466 = vunpack.c.l.b16 %v2319
  %v2467 = vunpack.c.h.b16 %v2319
  %v2468 = vunpack.c.l.b16 %v2320
  %v2469 = vunpack.c.h.b16 %v2320
  %v2470 = vunpack.c.l.b16 %v2321
  %v2471 = vunpack.c.h.b16 %v2321
  %v2472 = vunpack.c.l.b16 %v2322
  %v2473 = vunpack.c.h.b16 %v2322
  %v2474 = vunpack.c.l.b16 %v2323
  %v2475 = vunpack.c.h.b16 %v2323
  %v2476 = vunpack.c.l.b16 %v2324
  %v2477 = vunpack.c.h.b16 %v2324
  %v2478 = vunpack.c.l.b16 %v2325
  %v2479 = vunpack.c.h.b16 %v2325
  %v2480 = vunpack.c.l.b16 %v2326
  %v2481 = vunpack.c.h.b16 %v2326
  %v2482 = vunpack.c.l.b16 %v2327
  %v2483 = vunpack.c.h.b16 %v2327
  %v2484 = vunpack.c.l.b16 %v2328
  %v2485 = vunpack.c.h.b16 %v2328
  %v2486 = vunpack.c.l.b16 %v2329
  %v2487 = vunpack.c.h.b16 %v2329
  %v2488 = vunpack.c.l.b16 %v2330
  %v2489 = vunpack.c.h.b16 %v2330
  %v2490 = vunpack.c.l.b16 %v2331
  %v2491 = vunpack.c.h.b16 %v2331
  %v2492 = vunpack.c.l.b16 %v2332
  %v2493 = vunpack.c.h.b16 %v2332
  %v2494 = vunpack.c.l.b16 %v2333
  %v2495 = vunpack.c.h.b16 %v2333
  %v2496 = vpack.c.b16 %v2398, %v2396
  %v2497 = vpack.c.b16 %v2399, %v2397
  %v2498 = vpack.c.b16 %v2402, %v2400
  %v2499 = vpack.c.b16 %v2403, %v2401
  %v2500 = vpack.c.b16 %v2406, %v2404
  %v2501 = vpack.c.b16 %v2407, %v2405
  %v2502 = vpack.c.b16 %v2410, %v2408
  %v2503 = vpack.c.b16 %v2411, %v2409
  %v2504 = vpack.c.b16 %v2414, %v2412
  %v2505 = vpack.c.b16 %v2415, %v2413
  %v2506 = vpack.c.b16 %v2418, %v2416
  %v2507 = vpack.c.b16 %v2419, %v2417
  %v2508 = vpack.c.b16 %v2422, %v2420
  %v2509 = vpack.c.b16 %v2423, %v2421
  %v2510 = vpack.c.b16 %v2426, %v2424
  %v2511 = vpack.c.b16 %v2427, %v2425
  %v2512 = vpack.c.b16 %v2430, %v2428
  %v2513 = vpack.c.b16 %v2431, %v2429
  %v2514 = vpack.c.b16 %v2434, %v2432
  %v2515 = vpack.c.b16 %v2435, %v2433
  %v2516 = vpack.c.b16 %v2438, %v2436
  %v2517 = vpack.c.b16 %v2439, %v2437
  %v2518 = vpack.c.b16 %v2442, %v2440
  %v2519 = vpack.c.b16 %v2443, %v2441
  %v2520 = vpack.c.b16 %v2446, %v2444
  %v2521 = vpack.c.b16 %v2447, %v2445
  %v2522 = vpack.c.b16 %v2450, %v2448
  %v2523 = vpack.c.b16 %v2451, %v2449
  %v2524 = vpack.c.b16 %v2454, %v2452
  %v2525 = vpack.c.b16 %v2455, %v2453
  %v2526 = vpack.c.b16 %v2458, %v2456
  %v2527 = vpack.c.b16 %v2459, %v2457
  %v2528 = vpack.c.b16 %v2462, %v2460
  %v2529 = vpack.c.b16 %v2463, %v2461
  %v2530 = vpack.c.b16 %v2466, %v2464
  %v2531 = vpack.c.b16 %v2467, %v2465
  %v2532 = vpack.c.b16 %v2470, %v2468
  %v2533 = vpack.c.b16 %v2471, %v2469
  %v2534 = vpack.c.b16 %v2474, %v2472
  %v2535 = vpack.c.b16 %v2475, %v2473
  %v2536 = vpack.c.b16 %v2478, %v2476
  %v2537 = vpack.c.b16 %v2479, %v2477
  %v2538 = vpack.c.b16 %v2482, %v2480
  %v2539 = vpack.c.b16 %v2483, %v2481
  %v2540 = vpack.c.b16 %v2486, %v2484
  %v2541 = vpack.c.b16 %v2487, %v2485
  %v2542 = vpack.c.b16 %v2490, %v2488
  %v2543 = vpack.c.b16 %v2491, %v2489
  %v2544 = vpack.c.b16 %v2494, %v2492
  %v2545 = vpack.c.b16 %v2495, %v2493
  %vm2596 = vcmask 130048
  %v2598 = vsel %vm2596, %v2283, 0
  %2600 = vmatprep.subr.bf16.mxu0 %v2511
  %2601 = vmatpush1.bf16.msra.mxu0 %v2510
  %2602 = vmatprep.subr.bf16.mxu0 %v2509
  %2603 = vmatpush1.bf16.msra.mxu0 %v2508
  %2604 = vmatprep.subr.bf16.mxu0 %v2507
  %2605 = vmatpush1.bf16.msra.mxu0 %v2506
  %2606 = vmatprep.subr.bf16.mxu0 %v2505
  %2607 = vmatpush1.bf16.msra.mxu0 %v2504
  %2608 = vmatprep.subr.bf16.mxu0 %v2503
  %2609 = vmatpush1.bf16.msra.mxu0 %v2502
  %2610 = vmatprep.subr.bf16.mxu0 %v2501
  %2611 = vmatpush1.bf16.msra.mxu0 %v2500
  %2612 = vmatprep.subr.bf16.mxu0 %v2499
  %2613 = vmatpush1.bf16.msra.mxu0 %v2498
  %2614 = vmatprep.subr.bf16.mxu0 %v2497
  %2615 = vmatpush1.bf16.msra.mxu0 %v2496
  %2616 = vmatprep.subr.bf16.mxu0 %v2527
  %2617 = vmatpush2.bf16.msra.mxu0 %v2526
  %2618 = vmatprep.subr.bf16.mxu0 %v2525
  %2619 = vmatpush2.bf16.msra.mxu0 %v2524
  %2620 = vmatprep.subr.bf16.mxu0 %v2523
  %2621 = vmatpush2.bf16.msra.mxu0 %v2522
  %2622 = vmatprep.subr.bf16.mxu0 %v2521
  %2623 = vmatpush2.bf16.msra.mxu0 %v2520
  %2624 = vmatprep.subr.bf16.mxu0 %v2519
  %2625 = vmatpush2.bf16.msra.mxu0 %v2518
  %2626 = vmatprep.subr.bf16.mxu0 %v2517
  %2627 = vmatpush2.bf16.msra.mxu0 %v2516
  %2628 = vmatprep.subr.bf16.mxu0 %v2515
  %2629 = vmatpush2.bf16.msra.mxu0 %v2514
  %2630 = vmatprep.subr.bf16.mxu0 %v2513
  %2631 = vmatpush2.bf16.msra.mxu0 %v2512
  %2632 = vmatprep.mubr.bf16.mxu0 %v2281
  %2633 = vmatmul.mubr.bf16.gmra.mxu0 %v2280
  %v2634 = vpop.f32.mrf.mxu0
  %v2635 = vadd.f32 %v2339, %v2634
  %v2636 = vpop.f32.mrf.mxu0
  %v2637 = vadd.f32 %v2343, %v2636
  %v2638 = vpop.f32.mrf.mxu0
  %v2639 = vpop.f32.mrf.mxu0
  %2640 = vdwg.mxu0
  %2641 = vmatprep.subr.bf16.mxu0 %v2543
  %2642 = vmatpush1.bf16.msra.mxu0 %v2542
  %2643 = vmatprep.subr.bf16.mxu0 %v2541
  %2644 = vmatpush1.bf16.msra.mxu0 %v2540
  %2645 = vmatprep.subr.bf16.mxu0 %v2539
  %2646 = vmatpush1.bf16.msra.mxu0 %v2538
  %2647 = vmatprep.subr.bf16.mxu0 %v2537
  %2648 = vmatpush1.bf16.msra.mxu0 %v2536
  %2649 = vmatprep.subr.bf16.mxu0 %v2535
  %2650 = vmatpush1.bf16.msra.mxu0 %v2534
  %2651 = vmatprep.subr.bf16.mxu0 %v2533
  %2652 = vmatpush1.bf16.msra.mxu0 %v2532
  %2653 = vmatprep.subr.bf16.mxu0 %v2531
  %2654 = vmatpush1.bf16.msra.mxu0 %v2530
  %2655 = vmatprep.subr.bf16.mxu0 %v2529
  %2656 = vmatpush1.bf16.msra.mxu0 %v2528
  %2657 = vmatprep.subr.bf16.mxu0 0
  %2658 = vmatpush2.bf16.msra.mxu0 0
  %2659 = vmatprep.subr.bf16.mxu0 0
  %2660 = vmatpush2.bf16.msra.mxu0 0
  %2661 = vmatprep.subr.bf16.mxu0 0
  %2662 = vmatpush2.bf16.msra.mxu0 0
  %2663 = vmatprep.subr.bf16.mxu0 0
  %2664 = vmatpush2.bf16.msra.mxu0 0
  %2665 = vmatprep.subr.bf16.mxu0 0
  %2666 = vmatpush2.bf16.msra.mxu0 0
  %2667 = vmatprep.subr.bf16.mxu0 0
  %2668 = vmatpush2.bf16.msra.mxu0 0
  %2669 = vmatprep.subr.bf16.mxu0 0
  %2670 = vmatpush2.bf16.msra.mxu0 0
  %2671 = vmatprep.subr.bf16.mxu0 %v2545
  %2672 = vmatpush2.bf16.msra.mxu0 %v2544
  %2673 = vmatprep.mubr.bf16.mxu0 %v2598
  %2674 = vmatmul.mubr.bf16.gmra.mxu0 %v2282
  %v2675 = vpop.f32.mrf.mxu0
  %v2676 = vadd.f32 %v2635, %v2675
  %v2677 = vpop.f32.mrf.mxu0
  %v2678 = vadd.f32 %v2637, %v2677
  %v2679 = vpop.f32.mrf.mxu0
  %v2680 = vpop.f32.mrf.mxu0
  %2681 = vdwg.mxu0
  %v2682 = vmax.f32 %v2676, 0.0
  %v2683 = vmax.f32 %v2678, 0.0
  %v2684 = vld [vmem:[%s7] sm:$0xff]
  %v2685 = vld [vmem:[%s7 + $0x8] sm:$0xff]
  %v2686 = vld [vmem:[%s7 + $0x10] sm:$0xff]
  %v2687 = vld [vmem:[%s7 + $0x18] sm:$0xff]
  %v2688 = vld [vmem:[%s7 + $0x20] sm:$0xff]
  %v2689 = vld [vmem:[%s7 + $0x28] sm:$0xff]
  %v2690 = vld [vmem:[%s7 + $0x30] sm:$0xff]
  %v2691 = vld [vmem:[%s7 + $0x38] sm:$0xff]
  %v2692 = vld [vmem:[%s7 + $0x40] sm:$0xff]
  %v2693 = vld [vmem:[%s7 + $0x48] sm:$0xff]
  %v2694 = vld [vmem:[%s7 + $0x50] sm:$0xff]
  %v2695 = vld [vmem:[%s7 + $0x58] sm:$0xff]
  %v2696 = vld [vmem:[%s7 + $0x60] sm:$0xff]
  %v2697 = vld [vmem:[%s7 + $0x68] sm:$0xff]
  %v2698 = vld [vmem:[%s7 + $0x70] sm:$0xff]
  %v2699 = vld [vmem:[%s7 + $0x78] sm:$0xff]
  %v2700 = vld [vmem:[%s7 + $0x80] sm:$0xff]
  %v2701 = vld [vmem:[%s7 + $0x88] sm:$0xff]
  %v2702 = vld [vmem:[%s8] sm:$0x1]
  %v2704 = vlaneseq
  %v2705 = vshrl.u32 %v2704, 7
  %v2706 = vsub.s32 0, %v2705
  %v2707 = vrot.slane %v2702, %v2706
  %v2710 = vsel %vm2596, %v2683, 0
  %2712 = vmatprep.subr.mxu0 0.0
  %2713 = vmatpush1.msra.mxu0 %v2699
  %2714 = vmatprep.subr.mxu0 0.0
  %2715 = vmatpush1.msra.mxu0 %v2698
  %2716 = vmatprep.subr.mxu0 0.0
  %2717 = vmatpush1.msra.mxu0 %v2697
  %2718 = vmatprep.subr.mxu0 0.0
  %2719 = vmatpush1.msra.mxu0 %v2696
  %2720 = vmatprep.subr.mxu0 0.0
  %2721 = vmatpush1.msra.mxu0 %v2695
  %2722 = vmatprep.subr.mxu0 0.0
  %2723 = vmatpush1.msra.mxu0 %v2694
  %2724 = vmatprep.subr.mxu0 0.0
  %2725 = vmatpush1.msra.mxu0 %v2693
  %2726 = vmatprep.subr.mxu0 0.0
  %2727 = vmatpush1.msra.mxu0 %v2692
  %2728 = vmatprep.subr.mxu0 0.0
  %2729 = vmatpush1.msra.mxu0 %v2691
  %2730 = vmatprep.subr.mxu0 0.0
  %2731 = vmatpush1.msra.mxu0 %v2690
  %2732 = vmatprep.subr.mxu0 0.0
  %2733 = vmatpush1.msra.mxu0 %v2689
  %2734 = vmatprep.subr.mxu0 0.0
  %2735 = vmatpush1.msra.mxu0 %v2688
  %2736 = vmatprep.subr.mxu0 0.0
  %2737 = vmatpush1.msra.mxu0 %v2687
  %2738 = vmatprep.subr.mxu0 0.0
  %2739 = vmatpush1.msra.mxu0 %v2686
  %2740 = vmatprep.subr.mxu0 0.0
  %2741 = vmatpush1.msra.mxu0 %v2685
  %2742 = vmatprep.subr.mxu0 0.0
  %2743 = vmatpush1.msra.mxu0 %v2684
  %2744 = vmatprep.subr.mxu0 0.0
  %2745 = vmatpush2.msra.mxu0 0.0
  %2746 = vmatprep.subr.mxu0 0.0
  %2747 = vmatpush2.msra.mxu0 0.0
  %2748 = vmatprep.subr.mxu0 0.0
  %2749 = vmatpush2.msra.mxu0 0.0
  %2750 = vmatprep.subr.mxu0 0.0
  %2751 = vmatpush2.msra.mxu0 0.0
  %2752 = vmatprep.subr.mxu0 0.0
  %2753 = vmatpush2.msra.mxu0 0.0
  %2754 = vmatprep.subr.mxu0 0.0
  %2755 = vmatpush2.msra.mxu0 0.0
  %2756 = vmatprep.subr.mxu0 0.0
  %2757 = vmatpush2.msra.mxu0 0.0
  %2758 = vmatprep.subr.mxu0 0.0
  %2759 = vmatpush2.msra.mxu0 0.0
  %2760 = vmatprep.subr.mxu0 0.0
  %2761 = vmatpush2.msra.mxu0 0.0
  %2762 = vmatprep.subr.mxu0 0.0
  %2763 = vmatpush2.msra.mxu0 0.0
  %2764 = vmatprep.subr.mxu0 0.0
  %2765 = vmatpush2.msra.mxu0 0.0
  %2766 = vmatprep.subr.mxu0 0.0
  %2767 = vmatpush2.msra.mxu0 0.0
  %2768 = vmatprep.subr.mxu0 0.0
  %2769 = vmatpush2.msra.mxu0 0.0
  %2770 = vmatprep.subr.mxu0 0.0
  %2771 = vmatpush2.msra.mxu0 0.0
  %2772 = vmatprep.subr.mxu0 0.0
  %2773 = vmatpush2.msra.mxu0 %v2701
  %2774 = vmatprep.subr.mxu0 0.0
  %2775 = vmatpush2.msra.mxu0 %v2700
  %2776 = vmatprep.mubr.f32.mxu0 %v2710
  %2777 = vmatmul.mubr.f32.gmra.mxu0 %v2682
  %v2778 = vpop.f32.mrf.mxu0
  %v2779 = vadd.f32 %v2707, %v2778
  %v2780 = vpop.f32.mrf.mxu0
  %2781 = vdwg.mxu0
  %2782 = vxpose.xlu0.b32.start [1/16] %v2779, 128
  %2783 = vxpose.xlu0.b32.cont [2/16] 0.0, 128
  %2784 = vxpose.xlu0.b32.cont [3/16] 0.0, 128
  %2785 = vxpose.xlu0.b32.cont [4/16] 0.0, 128
  %2786 = vxpose.xlu0.b32.cont [5/16] 0.0, 128
  %2787 = vxpose.xlu0.b32.cont [6/16] 0.0, 128
  %2788 = vxpose.xlu0.b32.cont [7/16] 0.0, 128
  %2789 = vxpose.xlu0.b32.cont [8/16] 0.0, 128
  %2790 = vxpose.xlu0.b32.cont [9/16] 0.0, 128
  %2791 = vxpose.xlu0.b32.cont [10/16] 0.0, 128
  %2792 = vxpose.xlu0.b32.cont [11/16] 0.0, 128
  %2793 = vxpose.xlu0.b32.cont [12/16] 0.0, 128
  %2794 = vxpose.xlu0.b32.cont [13/16] 0.0, 128
  %2795 = vxpose.xlu0.b32.cont [14/16] 0.0, 128
  %2796 = vxpose.xlu0.b32.cont [15/16] 0.0, 128
  %2797 = vxpose.xlu0.b32.end [16/16] 0.0, 128
  %v2798 = vpop.trf.xlu0
  %v2799 = vpop.trf.xlu0
  %v2800 = vpop.trf.xlu0
  %v2801 = vpop.trf.xlu0
  %v2802 = vpop.trf.xlu0
  %v2803 = vpop.trf.xlu0
  %v2804 = vpop.trf.xlu0
  %v2805 = vpop.trf.xlu0
  %v2806 = vpop.trf.xlu0
  %v2807 = vpop.trf.xlu0
  %v2808 = vpop.trf.xlu0
  %v2809 = vpop.trf.xlu0
  %v2810 = vpop.trf.xlu0
  %v2811 = vpop.trf.xlu0
  %v2812 = vpop.trf.xlu0
  %v2813 = vpop.trf.xlu0
  %vm2814 = vcmask 60416
  %2815 = vst.msk [vmem:[%s9] sm:$0xf] %vm2814, %v2798
  // Predicated region
  $region38: #{qfunction_forward.1} parent=0 // pred_check
    _
  $region39: #{qfunction_forward.1} parent=0 // pred_check_branch
    %2817 = sbr.rel (0) target = $region41
  $region40: #{qfunction_forward.1} parent=0 // pred_region
    _
  $region41: #{qfunction_forward.1} parent=0 // pred_fallthru
    _
  // Predicated region
  $region42: #{qfunction_forward.1} parent=0 // pred_check
    _
  $region43: #{qfunction_forward.1} parent=0 // pred_check_branch
    %2819 = sbr.rel (0) target = $region45
  $region44: #{qfunction_forward.1} parent=0 // pred_region
    _
  $region45: #{qfunction_forward.1} parent=0 // pred_fallthru
    _

</llo_original>
